<compile_context>
chip_gen: v7x
topology: tpu7x:2x2x1
jax: 0.10.0
libtpu: 0.0.40
codegen_flags: <defaults>
</compile_context>

<pallas_src>
import jax
import jax.numpy as jnp
from jax.experimental import pallas as pl
from jax.experimental.pallas import tpu as pltpu

L_IN = 512                   # input length
KW = 5                       # conv kernel / pool window
L_CONV = L_IN - (KW - 1)     # 508 valid conv positions
L_POOL = L_CONV - (KW - 1)   # 504 valid pooled positions
N_CH = 4                     # conv output channels
H1 = 64
H2 = 8

L_K = 512                    # contraction dim padded 504 -> 512 (4 lane tiles)
L_CONVW = L_K + (KW - 1)     # 516: conv width needed for a 512-wide pool
L_XPAD = L_CONVW + (KW - 1)  # 520: zero-padded input width fed to the kernel


def _round_up(x, m):
    return ((x + m - 1) // m) * m


def cnn_kernel(x_ref, cw_ref, cb_ref, w1_ref, b1_ref, w2_ref, b2_ref,
               wp_ref, bp_ref, out_ref):
    """One batch block: conv+relu -> maxpool -> 2 fused linears -> predict."""
    nb = x_ref.shape[0]
    x = x_ref[...]                                       # (nb, 520) compute dt

    # Hoist the 5 shifted conv taps once (lane-unaligned slices -> XLU
    # relayouts, done once and reused by all 4 channels).
    taps = [x[:, k:k + L_CONVW] for k in range(KW)]      # 5 x (nb, 516)

    acc = jnp.zeros((nb, H2), jnp.float32)

    # Static 4-iteration channel loop; each iteration ends with the two MXU
    # matmuls so the scheduler can hide them under the next channel's VPU
    # conv/pool work.
    for c in range(N_CH):
        # --- Conv1d(1, 4, 5) + ReLU for channel c (compute-dtype VPU madds;
        #     weight rows are lane-broadcast (1, 516) slabs) ---
        conv = taps[0] * cw_ref[pl.ds(c * KW, 1), :]
        for k in range(1, KW):
            conv = conv + taps[k] * cw_ref[pl.ds(c * KW + k, 1), :]
        conv = jnp.maximum(conv + cb_ref[pl.ds(c, 1), :], 0.0)   # (nb, 516)

        # --- MaxPool1d(5, stride=1), log-tree: 3 maxes / 3 shifted slices ---
        m1 = jnp.maximum(conv[:, 0:L_K + 2], conv[:, 1:L_K + 3])  # windows of 2
        m2 = jnp.maximum(m1[:, 0:L_K], m1[:, 2:L_K + 2])          # windows of 4
        pooled = jnp.maximum(m2, conv[:, 4:L_K + 4])              # (nb, 512)
        # Columns 504..511 are finite junk; they hit the zero rows 504..511
        # of w1 below and contribute nothing (finite inputs assumed).

        # --- Linear(504->64) + ReLU (MXU, f32 accumulate) ---
        h1 = jnp.dot(pooled, w1_ref[...], preferred_element_type=jnp.float32)
        h1 = jnp.maximum(h1 + b1_ref[...], 0.0)                   # (nb, 64) f32

        # --- Linear(64->8) + ReLU (MXU, f32 accumulate) ---
        h2 = jnp.dot(h1.astype(w2_ref.dtype), w2_ref[...],
                     preferred_element_type=jnp.float32)
        h2 = jnp.maximum(h2 + b2_ref[...], 0.0)                   # (nb, 8) f32

        # --- predict: Linear(32, 1) on the channel-major flatten (c*8 + j) —
        #     accumulate the per-channel contribution lane-dense. ---
        acc = acc + h2 * wp_ref[c, :]

    out_ref[...] = jnp.sum(acc, axis=-1, keepdims=True) + bp_ref[0]


def conv_net_forward(x, params, *, block_rows=512, compute_dtype=jnp.bfloat16):
    """x: (N, 1, 512) -> (N, 1, 1), matching the PyTorch module.

    compute_dtype=bf16 is the fast path on v6e/v7x (bf16 VPU + MXU); use
    compute_dtype=float32 on v5e or for tight numerical checks.
    """
    cw, cb, w1, b1, w2, b2, wp, bp = params
    n = x.shape[0]

    # Batch blocking: sublane-aligned block, batch padded to a whole grid.
    # block_rows=512 keeps everything well inside a 48 MiB VMEM budget; do
    # not sweep this up past ~1024 without also raising vmem_limit_bytes.
    nb = int(min(block_rows, _round_up(max(n, 1), 8)))
    nb = _round_up(nb, 8)
    # v7x megacore: prefer >= 2 "parallel" grid steps when the batch allows
    # it so both TensorCores get work and the x DMA has a step to overlap.
    if _round_up(n, nb) // nb < 2 and nb > 8:
        nb = _round_up(-(-n // 2), 8)
    n_pad = _round_up(n, nb)
    grid = (n_pad // nb,)

    # (N, 512) -> pad rows to n_pad and columns 512 -> 520 (zeros) so the
    # kernel can take full-width shifted conv/pool taps with no tail handling.
    xs = x[:, 0, :].astype(compute_dtype)
    xs = jnp.pad(xs, ((0, n_pad - n), (0, L_XPAD - L_IN)))

    # Conv weights / bias pre-broadcast along lanes (~25 KiB resident): the
    # in-kernel conv becomes plain sublane-broadcast multiplies in the compute
    # dtype, keeping the conv/pool stage entirely on the bf16 VPU path.
    cw_rows = jnp.broadcast_to(cw.reshape(N_CH * KW, 1),
                               (N_CH * KW, L_CONVW)).astype(compute_dtype)
    cb_rows = jnp.broadcast_to(cb.reshape(N_CH, 1),
                               (N_CH, L_CONVW)).astype(compute_dtype)

    # Pad the contraction dim 504 -> 512 with zero rows; matmul weights in
    # the compute dtype, biases / predict weights stay f32.
    w1p = jnp.pad(w1, ((0, L_K - L_POOL), (0, 0))).astype(compute_dtype)
    w2c = w2.astype(compute_dtype)
    b1f = b1.reshape(1, H1).astype(jnp.float32)
    b2f = b2.reshape(1, H2).astype(jnp.float32)
    wpf = wp.astype(jnp.float32)
    bpf = bp.astype(jnp.float32)

    smem = pl.BlockSpec(memory_space=pltpu.MemorySpace.SMEM)

    out = pl.pallas_call(
        cnn_kernel,
        out_shape=jax.ShapeDtypeStruct((n_pad, 1), jnp.float32),
        grid=grid,
        in_specs=[
            pl.BlockSpec((nb, L_XPAD), lambda i: (i, 0)),         # x (blocked)
            pl.BlockSpec((N_CH * KW, L_CONVW), lambda i: (0, 0)),  # cw rows
            pl.BlockSpec((N_CH, L_CONVW), lambda i: (0, 0)),       # cb rows
            pl.BlockSpec((L_K, H1), lambda i: (0, 0)),             # w1 resident
            pl.BlockSpec((1, H1), lambda i: (0, 0)),               # b1 resident
            pl.BlockSpec((H1, H2), lambda i: (0, 0)),              # w2 resident
            pl.BlockSpec((1, H2), lambda i: (0, 0)),               # b2 resident
            pl.BlockSpec((N_CH, H2), lambda i: (0, 0)),            # wp resident
            smem,                                                   # bp (1,)
        ],
        out_specs=pl.BlockSpec((nb, 1), lambda i: (i, 0)),
        compiler_params=pltpu.CompilerParams(
            dimension_semantics=("parallel",),
            vmem_limit_bytes=48 * 1024 * 1024,
        ),
    )(xs, cw_rows, cb_rows, w1p, b1f, w2c, b2f, wpf, bpf)

    return out[:n].reshape(n, 1, 1)


def init_params(key):
    """Deterministic parameter init (PyTorch-style uniform bounds)."""
    ks = jax.random.split(key, 8)

    def u(k, shape, fan_in):
        b = 1.0 / jnp.sqrt(jnp.float32(fan_in))
        return jax.random.uniform(k, shape, jnp.float32, -b, b)

    cw = u(ks[0], (N_CH, KW), KW)          # Conv1d weight (out_ch, in_ch*k), in_ch=1
    cb = u(ks[1], (N_CH,), KW)             # Conv1d bias
    w1 = u(ks[2], (L_POOL, H1), L_POOL)    # Linear(504,64) weight, stored transposed
    b1 = u(ks[3], (1, H1), L_POOL)
    w2 = u(ks[4], (H1, H2), H1)            # Linear(64,8) weight, transposed
    b2 = u(ks[5], (1, H2), H1)
    wp = u(ks[6], (N_CH, H2), N_CH * H2)   # Linear(32,1) weight reshaped to (4, 8)
    bp = u(ks[7], (1,), N_CH * H2)
    return (cw, cb, w1, b1, w2, b2, wp, bp)


def forward_ref(x, params):
    """Pure-JAX f32 reference with identical semantics (sanity check)."""
    cw, cb, w1, b1, w2, b2, wp, bp = params
    n = x.shape[0]
    xs = x[:, 0, :]
    conv = jnp.stack(
        [sum(cw[c, k] * xs[:, k:k + L_CONV] for k in range(KW)) + cb[c]
         for c in range(N_CH)], axis=1)                                  # (N,4,508)
    conv = jnp.maximum(conv, 0.0)
    pooled = jnp.max(
        jnp.stack([conv[:, :, j:j + L_POOL] for j in range(KW)], axis=0),
        axis=0)                                                          # (N,4,504)
    h1 = jnp.maximum(pooled @ w1 + b1[0], 0.0)                           # (N,4,64)
    h2 = jnp.maximum(h1 @ w2 + b2[0], 0.0)                               # (N,4,8)
    flat = h2.reshape(n, 1, N_CH * H2)
    return flat @ wp.reshape(N_CH * H2, 1) + bp[0]                       # (N,1,1)


if __name__ == "__main__":
    key = jax.random.PRNGKey(0)
    kx, kp = jax.random.split(key)
    # batch=2, single input channel, length 512 (required by Linear(504, 64))
    x = jax.random.normal(kx, (2, 1, L_IN), dtype=jnp.float32)
    params = init_params(kp)

    y_ref = forward_ref(x, params)

    # f32 compute path: tight check of the kernel structure vs the reference.
    y_f32 = jax.block_until_ready(
        conv_net_forward(x, params, compute_dtype=jnp.float32))
    assert y_f32.shape == (2, 1, 1)
    assert jnp.allclose(y_f32, y_ref, atol=1e-3, rtol=1e-3)

    # bf16 fast path (default for v6e/v7x): documented looser tolerance.
    y_bf16 = jax.block_until_ready(conv_net_forward(x, params))
    assert y_bf16.shape == (2, 1, 1)
    assert jnp.allclose(y_bf16, y_ref, atol=5e-2, rtol=5e-2)

    print("KERNEL_OK")
</pallas_src>

<mosaic_0001>
module attributes {stable_mosaic.version = 11 : i64} {
  func.func @cnn_kernel(%arg0: i32, %arg1: memref<8x520xf32, #tpu.memory_space<vmem>>, %arg2: memref<20x516xf32, #tpu.memory_space<vmem>>, %arg3: memref<4x516xf32, #tpu.memory_space<vmem>>, %arg4: memref<512x64xf32, #tpu.memory_space<vmem>>, %arg5: memref<1x64xf32, #tpu.memory_space<vmem>>, %arg6: memref<64x8xf32, #tpu.memory_space<vmem>>, %arg7: memref<1x8xf32, #tpu.memory_space<vmem>>, %arg8: memref<4x8xf32, #tpu.memory_space<vmem>>, %arg9: memref<1xf32, #tpu.memory_space<smem>>, %arg10: memref<8x1xf32, #tpu.memory_space<vmem>>) attributes {dimension_semantics = [#tpu.dimension_semantics<parallel>], iteration_bounds = array<i64: 1>, scalar_prefetch = 0 : i64, scratch_operands = 0 : i64, tpu.core_type = #tpu.core_type<tc>, window_params = [{transform_indices = @transform_0, window_bounds = array<i64: 8, 520>}, {pipeline_mode = #tpu.pipeline_mode<synchronous>, transform_indices = @transform_1, window_bounds = array<i64: 20, 516>}, {pipeline_mode = #tpu.pipeline_mode<synchronous>, transform_indices = @transform_2, window_bounds = array<i64: 4, 516>}, {pipeline_mode = #tpu.pipeline_mode<synchronous>, transform_indices = @transform_3, window_bounds = array<i64: 512, 64>}, {pipeline_mode = #tpu.pipeline_mode<synchronous>, transform_indices = @transform_4, window_bounds = array<i64: 1, 64>}, {pipeline_mode = #tpu.pipeline_mode<synchronous>, transform_indices = @transform_5, window_bounds = array<i64: 64, 8>}, {pipeline_mode = #tpu.pipeline_mode<synchronous>, transform_indices = @transform_6, window_bounds = array<i64: 1, 8>}, {pipeline_mode = #tpu.pipeline_mode<synchronous>, transform_indices = @transform_7, window_bounds = array<i64: 4, 8>}, {transform_indices = @transform_8, window_bounds = array<i64: 1>}, {transform_indices = @transform_9, window_bounds = array<i64: 8, 1>}]} {
    %c0 = arith.constant 0 : index
    %c0_0 = arith.constant 0 : index
    %0 = vector.load %arg1[%c0, %c0_0] : memref<8x520xf32, #tpu.memory_space<vmem>>, vector<8x520xf32>
    %1 = vector.extract_strided_slice %0 {offsets = [0, 0], sizes = [8, 516], strides = [1, 1]} : vector<8x520xf32> to vector<8x516xf32>
    %2 = vector.extract_strided_slice %0 {offsets = [0, 1], sizes = [8, 516], strides = [1, 1]} : vector<8x520xf32> to vector<8x516xf32>
    %3 = vector.extract_strided_slice %0 {offsets = [0, 2], sizes = [8, 516], strides = [1, 1]} : vector<8x520xf32> to vector<8x516xf32>
    %4 = vector.extract_strided_slice %0 {offsets = [0, 3], sizes = [8, 516], strides = [1, 1]} : vector<8x520xf32> to vector<8x516xf32>
    %5 = vector.extract_strided_slice %0 {offsets = [0, 4], sizes = [8, 516], strides = [1, 1]} : vector<8x520xf32> to vector<8x516xf32>
    %cst = arith.constant 0.000000e+00 : f32
    %6 = vector.broadcast %cst : f32 to vector<8x8xf32>
    %c0_1 = arith.constant 0 : index
    %c0_2 = arith.constant 0 : index
    %7 = vector.load %arg2[%c0_1, %c0_2] : memref<20x516xf32, #tpu.memory_space<vmem>>, vector<1x516xf32>
    %8 = vector.broadcast %7 : vector<1x516xf32> to vector<8x516xf32>
    %9 = arith.mulf %1, %8 : vector<8x516xf32>
    %c1 = arith.constant 1 : index
    %c0_3 = arith.constant 0 : index
    %10 = vector.load %arg2[%c1, %c0_3] : memref<20x516xf32, #tpu.memory_space<vmem>>, vector<1x516xf32>
    %11 = vector.broadcast %10 : vector<1x516xf32> to vector<8x516xf32>
    %12 = arith.mulf %2, %11 : vector<8x516xf32>
    %13 = arith.addf %9, %12 : vector<8x516xf32>
    %c2 = arith.constant 2 : index
    %c0_4 = arith.constant 0 : index
    %14 = vector.load %arg2[%c2, %c0_4] : memref<20x516xf32, #tpu.memory_space<vmem>>, vector<1x516xf32>
    %15 = vector.broadcast %14 : vector<1x516xf32> to vector<8x516xf32>
    %16 = arith.mulf %3, %15 : vector<8x516xf32>
    %17 = arith.addf %13, %16 : vector<8x516xf32>
    %c3 = arith.constant 3 : index
    %c0_5 = arith.constant 0 : index
    %18 = vector.load %arg2[%c3, %c0_5] : memref<20x516xf32, #tpu.memory_space<vmem>>, vector<1x516xf32>
    %19 = vector.broadcast %18 : vector<1x516xf32> to vector<8x516xf32>
    %20 = arith.mulf %4, %19 : vector<8x516xf32>
    %21 = arith.addf %17, %20 : vector<8x516xf32>
    %c4 = arith.constant 4 : index
    %c0_6 = arith.constant 0 : index
    %22 = vector.load %arg2[%c4, %c0_6] : memref<20x516xf32, #tpu.memory_space<vmem>>, vector<1x516xf32>
    %23 = vector.broadcast %22 : vector<1x516xf32> to vector<8x516xf32>
    %24 = arith.mulf %5, %23 : vector<8x516xf32>
    %25 = arith.addf %21, %24 : vector<8x516xf32>
    %c0_7 = arith.constant 0 : index
    %c0_8 = arith.constant 0 : index
    %26 = vector.load %arg3[%c0_7, %c0_8] : memref<4x516xf32, #tpu.memory_space<vmem>>, vector<1x516xf32>
    %27 = vector.broadcast %26 : vector<1x516xf32> to vector<8x516xf32>
    %28 = arith.addf %25, %27 : vector<8x516xf32>
    %cst_9 = arith.constant 0.000000e+00 : f32
    %29 = vector.broadcast %cst_9 : f32 to vector<8x516xf32>
    %30 = arith.maximumf %28, %29 : vector<8x516xf32>
    %31 = vector.extract_strided_slice %30 {offsets = [0, 0], sizes = [8, 514], strides = [1, 1]} : vector<8x516xf32> to vector<8x514xf32>
    %32 = vector.extract_strided_slice %30 {offsets = [0, 1], sizes = [8, 514], strides = [1, 1]} : vector<8x516xf32> to vector<8x514xf32>
    %33 = arith.maximumf %31, %32 : vector<8x514xf32>
    %34 = vector.extract_strided_slice %33 {offsets = [0, 0], sizes = [8, 512], strides = [1, 1]} : vector<8x514xf32> to vector<8x512xf32>
    %35 = vector.extract_strided_slice %33 {offsets = [0, 2], sizes = [8, 512], strides = [1, 1]} : vector<8x514xf32> to vector<8x512xf32>
    %36 = arith.maximumf %34, %35 : vector<8x512xf32>
    %37 = vector.extract_strided_slice %30 {offsets = [0, 4], sizes = [8, 512], strides = [1, 1]} : vector<8x516xf32> to vector<8x512xf32>
    %38 = arith.maximumf %36, %37 : vector<8x512xf32>
    %c0_10 = arith.constant 0 : index
    %c0_11 = arith.constant 0 : index
    %39 = vector.load %arg4[%c0_10, %c0_11] : memref<512x64xf32, #tpu.memory_space<vmem>>, vector<512x64xf32>
    %cst_12 = arith.constant dense<0.000000e+00> : vector<8x64xf32>
    %40 = tpu.matmul %38, %39, %cst_12 {dimension_numbers = #tpu.dot_dimension_numbers<[1], [0], [0], [1], [0, 0, 1, 1], [], []>} : vector<8x512xf32>, vector<512x64xf32>, vector<8x64xf32> -> vector<8x64xf32>
    %c0_13 = arith.constant 0 : index
    %c0_14 = arith.constant 0 : index
    %41 = vector.load %arg5[%c0_13, %c0_14] : memref<1x64xf32, #tpu.memory_space<vmem>>, vector<1x64xf32>
    %42 = vector.broadcast %41 : vector<1x64xf32> to vector<8x64xf32>
    %43 = arith.addf %40, %42 : vector<8x64xf32>
    %cst_15 = arith.constant 0.000000e+00 : f32
    %44 = vector.broadcast %cst_15 : f32 to vector<8x64xf32>
    %45 = arith.maximumf %43, %44 : vector<8x64xf32>
    %c0_16 = arith.constant 0 : index
    %c0_17 = arith.constant 0 : index
    %46 = vector.load %arg6[%c0_16, %c0_17] : memref<64x8xf32, #tpu.memory_space<vmem>>, vector<64x8xf32>
    %cst_18 = arith.constant dense<0.000000e+00> : vector<8x8xf32>
    %47 = tpu.matmul %45, %46, %cst_18 {dimension_numbers = #tpu.dot_dimension_numbers<[1], [0], [0], [1], [0, 0, 1, 1], [], []>} : vector<8x64xf32>, vector<64x8xf32>, vector<8x8xf32> -> vector<8x8xf32>
    %c0_19 = arith.constant 0 : index
    %c0_20 = arith.constant 0 : index
    %48 = vector.load %arg7[%c0_19, %c0_20] : memref<1x8xf32, #tpu.memory_space<vmem>>, vector<1x8xf32>
    %49 = vector.broadcast %48 : vector<1x8xf32> to vector<8x8xf32>
    %50 = arith.addf %47, %49 : vector<8x8xf32>
    %cst_21 = arith.constant 0.000000e+00 : f32
    %51 = vector.broadcast %cst_21 : f32 to vector<8x8xf32>
    %52 = arith.maximumf %50, %51 : vector<8x8xf32>
    %c0_22 = arith.constant 0 : index
    %c0_23 = arith.constant 0 : index
    %53 = vector.load %arg8[%c0_22, %c0_23] : memref<4x8xf32, #tpu.memory_space<vmem>>, vector<1x8xf32>
    %54 = vector.shape_cast %53 : vector<1x8xf32> to vector<8xf32>
    %55 = vector.shape_cast %54 : vector<8xf32> to vector<1x8xf32>
    %56 = vector.broadcast %55 : vector<1x8xf32> to vector<8x8xf32>
    %57 = arith.mulf %52, %56 : vector<8x8xf32>
    %58 = arith.addf %6, %57 : vector<8x8xf32>
    %c5 = arith.constant 5 : index
    %c0_24 = arith.constant 0 : index
    %59 = vector.load %arg2[%c5, %c0_24] : memref<20x516xf32, #tpu.memory_space<vmem>>, vector<1x516xf32>
    %60 = vector.broadcast %59 : vector<1x516xf32> to vector<8x516xf32>
    %61 = arith.mulf %1, %60 : vector<8x516xf32>
    %c6 = arith.constant 6 : index
    %c0_25 = arith.constant 0 : index
    %62 = vector.load %arg2[%c6, %c0_25] : memref<20x516xf32, #tpu.memory_space<vmem>>, vector<1x516xf32>
    %63 = vector.broadcast %62 : vector<1x516xf32> to vector<8x516xf32>
    %64 = arith.mulf %2, %63 : vector<8x516xf32>
    %65 = arith.addf %61, %64 : vector<8x516xf32>
    %c7 = arith.constant 7 : index
    %c0_26 = arith.constant 0 : index
    %66 = vector.load %arg2[%c7, %c0_26] : memref<20x516xf32, #tpu.memory_space<vmem>>, vector<1x516xf32>
    %67 = vector.broadcast %66 : vector<1x516xf32> to vector<8x516xf32>
    %68 = arith.mulf %3, %67 : vector<8x516xf32>
    %69 = arith.addf %65, %68 : vector<8x516xf32>
    %c8 = arith.constant 8 : index
    %c0_27 = arith.constant 0 : index
    %70 = vector.load %arg2[%c8, %c0_27] : memref<20x516xf32, #tpu.memory_space<vmem>>, vector<1x516xf32>
    %71 = vector.broadcast %70 : vector<1x516xf32> to vector<8x516xf32>
    %72 = arith.mulf %4, %71 : vector<8x516xf32>
    %73 = arith.addf %69, %72 : vector<8x516xf32>
    %c9 = arith.constant 9 : index
    %c0_28 = arith.constant 0 : index
    %74 = vector.load %arg2[%c9, %c0_28] : memref<20x516xf32, #tpu.memory_space<vmem>>, vector<1x516xf32>
    %75 = vector.broadcast %74 : vector<1x516xf32> to vector<8x516xf32>
    %76 = arith.mulf %5, %75 : vector<8x516xf32>
    %77 = arith.addf %73, %76 : vector<8x516xf32>
    %c1_29 = arith.constant 1 : index
    %c0_30 = arith.constant 0 : index
    %78 = vector.load %arg3[%c1_29, %c0_30] : memref<4x516xf32, #tpu.memory_space<vmem>>, vector<1x516xf32>
    %79 = vector.broadcast %78 : vector<1x516xf32> to vector<8x516xf32>
    %80 = arith.addf %77, %79 : vector<8x516xf32>
    %cst_31 = arith.constant 0.000000e+00 : f32
    %81 = vector.broadcast %cst_31 : f32 to vector<8x516xf32>
    %82 = arith.maximumf %80, %81 : vector<8x516xf32>
    %83 = vector.extract_strided_slice %82 {offsets = [0, 0], sizes = [8, 514], strides = [1, 1]} : vector<8x516xf32> to vector<8x514xf32>
    %84 = vector.extract_strided_slice %82 {offsets = [0, 1], sizes = [8, 514], strides = [1, 1]} : vector<8x516xf32> to vector<8x514xf32>
    %85 = arith.maximumf %83, %84 : vector<8x514xf32>
    %86 = vector.extract_strided_slice %85 {offsets = [0, 0], sizes = [8, 512], strides = [1, 1]} : vector<8x514xf32> to vector<8x512xf32>
    %87 = vector.extract_strided_slice %85 {offsets = [0, 2], sizes = [8, 512], strides = [1, 1]} : vector<8x514xf32> to vector<8x512xf32>
    %88 = arith.maximumf %86, %87 : vector<8x512xf32>
    %89 = vector.extract_strided_slice %82 {offsets = [0, 4], sizes = [8, 512], strides = [1, 1]} : vector<8x516xf32> to vector<8x512xf32>
    %90 = arith.maximumf %88, %89 : vector<8x512xf32>
    %c0_32 = arith.constant 0 : index
    %c0_33 = arith.constant 0 : index
    %91 = vector.load %arg4[%c0_32, %c0_33] : memref<512x64xf32, #tpu.memory_space<vmem>>, vector<512x64xf32>
    %cst_34 = arith.constant dense<0.000000e+00> : vector<8x64xf32>
    %92 = tpu.matmul %90, %91, %cst_34 {dimension_numbers = #tpu.dot_dimension_numbers<[1], [0], [0], [1], [0, 0, 1, 1], [], []>} : vector<8x512xf32>, vector<512x64xf32>, vector<8x64xf32> -> vector<8x64xf32>
    %c0_35 = arith.constant 0 : index
    %c0_36 = arith.constant 0 : index
    %93 = vector.load %arg5[%c0_35, %c0_36] : memref<1x64xf32, #tpu.memory_space<vmem>>, vector<1x64xf32>
    %94 = vector.broadcast %93 : vector<1x64xf32> to vector<8x64xf32>
    %95 = arith.addf %92, %94 : vector<8x64xf32>
    %cst_37 = arith.constant 0.000000e+00 : f32
    %96 = vector.broadcast %cst_37 : f32 to vector<8x64xf32>
    %97 = arith.maximumf %95, %96 : vector<8x64xf32>
    %c0_38 = arith.constant 0 : index
    %c0_39 = arith.constant 0 : index
    %98 = vector.load %arg6[%c0_38, %c0_39] : memref<64x8xf32, #tpu.memory_space<vmem>>, vector<64x8xf32>
    %cst_40 = arith.constant dense<0.000000e+00> : vector<8x8xf32>
    %99 = tpu.matmul %97, %98, %cst_40 {dimension_numbers = #tpu.dot_dimension_numbers<[1], [0], [0], [1], [0, 0, 1, 1], [], []>} : vector<8x64xf32>, vector<64x8xf32>, vector<8x8xf32> -> vector<8x8xf32>
    %c0_41 = arith.constant 0 : index
    %c0_42 = arith.constant 0 : index
    %100 = vector.load %arg7[%c0_41, %c0_42] : memref<1x8xf32, #tpu.memory_space<vmem>>, vector<1x8xf32>
    %101 = vector.broadcast %100 : vector<1x8xf32> to vector<8x8xf32>
    %102 = arith.addf %99, %101 : vector<8x8xf32>
    %cst_43 = arith.constant 0.000000e+00 : f32
    %103 = vector.broadcast %cst_43 : f32 to vector<8x8xf32>
    %104 = arith.maximumf %102, %103 : vector<8x8xf32>
    %c1_44 = arith.constant 1 : index
    %c0_45 = arith.constant 0 : index
    %105 = vector.load %arg8[%c1_44, %c0_45] : memref<4x8xf32, #tpu.memory_space<vmem>>, vector<1x8xf32>
    %106 = vector.shape_cast %105 : vector<1x8xf32> to vector<8xf32>
    %107 = vector.shape_cast %106 : vector<8xf32> to vector<1x8xf32>
    %108 = vector.broadcast %107 : vector<1x8xf32> to vector<8x8xf32>
    %109 = arith.mulf %104, %108 : vector<8x8xf32>
    %110 = arith.addf %58, %109 : vector<8x8xf32>
    %c10 = arith.constant 10 : index
    %c0_46 = arith.constant 0 : index
    %111 = vector.load %arg2[%c10, %c0_46] : memref<20x516xf32, #tpu.memory_space<vmem>>, vector<1x516xf32>
    %112 = vector.broadcast %111 : vector<1x516xf32> to vector<8x516xf32>
    %113 = arith.mulf %1, %112 : vector<8x516xf32>
    %c11 = arith.constant 11 : index
    %c0_47 = arith.constant 0 : index
    %114 = vector.load %arg2[%c11, %c0_47] : memref<20x516xf32, #tpu.memory_space<vmem>>, vector<1x516xf32>
    %115 = vector.broadcast %114 : vector<1x516xf32> to vector<8x516xf32>
    %116 = arith.mulf %2, %115 : vector<8x516xf32>
    %117 = arith.addf %113, %116 : vector<8x516xf32>
    %c12 = arith.constant 12 : index
    %c0_48 = arith.constant 0 : index
    %118 = vector.load %arg2[%c12, %c0_48] : memref<20x516xf32, #tpu.memory_space<vmem>>, vector<1x516xf32>
    %119 = vector.broadcast %118 : vector<1x516xf32> to vector<8x516xf32>
    %120 = arith.mulf %3, %119 : vector<8x516xf32>
    %121 = arith.addf %117, %120 : vector<8x516xf32>
    %c13 = arith.constant 13 : index
    %c0_49 = arith.constant 0 : index
    %122 = vector.load %arg2[%c13, %c0_49] : memref<20x516xf32, #tpu.memory_space<vmem>>, vector<1x516xf32>
    %123 = vector.broadcast %122 : vector<1x516xf32> to vector<8x516xf32>
    %124 = arith.mulf %4, %123 : vector<8x516xf32>
    %125 = arith.addf %121, %124 : vector<8x516xf32>
    %c14 = arith.constant 14 : index
    %c0_50 = arith.constant 0 : index
    %126 = vector.load %arg2[%c14, %c0_50] : memref<20x516xf32, #tpu.memory_space<vmem>>, vector<1x516xf32>
    %127 = vector.broadcast %126 : vector<1x516xf32> to vector<8x516xf32>
    %128 = arith.mulf %5, %127 : vector<8x516xf32>
    %129 = arith.addf %125, %128 : vector<8x516xf32>
    %c2_51 = arith.constant 2 : index
    %c0_52 = arith.constant 0 : index
    %130 = vector.load %arg3[%c2_51, %c0_52] : memref<4x516xf32, #tpu.memory_space<vmem>>, vector<1x516xf32>
    %131 = vector.broadcast %130 : vector<1x516xf32> to vector<8x516xf32>
    %132 = arith.addf %129, %131 : vector<8x516xf32>
    %cst_53 = arith.constant 0.000000e+00 : f32
    %133 = vector.broadcast %cst_53 : f32 to vector<8x516xf32>
    %134 = arith.maximumf %132, %133 : vector<8x516xf32>
    %135 = vector.extract_strided_slice %134 {offsets = [0, 0], sizes = [8, 514], strides = [1, 1]} : vector<8x516xf32> to vector<8x514xf32>
    %136 = vector.extract_strided_slice %134 {offsets = [0, 1], sizes = [8, 514], strides = [1, 1]} : vector<8x516xf32> to vector<8x514xf32>
    %137 = arith.maximumf %135, %136 : vector<8x514xf32>
    %138 = vector.extract_strided_slice %137 {offsets = [0, 0], sizes = [8, 512], strides = [1, 1]} : vector<8x514xf32> to vector<8x512xf32>
    %139 = vector.extract_strided_slice %137 {offsets = [0, 2], sizes = [8, 512], strides = [1, 1]} : vector<8x514xf32> to vector<8x512xf32>
    %140 = arith.maximumf %138, %139 : vector<8x512xf32>
    %141 = vector.extract_strided_slice %134 {offsets = [0, 4], sizes = [8, 512], strides = [1, 1]} : vector<8x516xf32> to vector<8x512xf32>
    %142 = arith.maximumf %140, %141 : vector<8x512xf32>
    %c0_54 = arith.constant 0 : index
    %c0_55 = arith.constant 0 : index
    %143 = vector.load %arg4[%c0_54, %c0_55] : memref<512x64xf32, #tpu.memory_space<vmem>>, vector<512x64xf32>
    %cst_56 = arith.constant dense<0.000000e+00> : vector<8x64xf32>
    %144 = tpu.matmul %142, %143, %cst_56 {dimension_numbers = #tpu.dot_dimension_numbers<[1], [0], [0], [1], [0, 0, 1, 1], [], []>} : vector<8x512xf32>, vector<512x64xf32>, vector<8x64xf32> -> vector<8x64xf32>
    %c0_57 = arith.constant 0 : index
    %c0_58 = arith.constant 0 : index
    %145 = vector.load %arg5[%c0_57, %c0_58] : memref<1x64xf32, #tpu.memory_space<vmem>>, vector<1x64xf32>
    %146 = vector.broadcast %145 : vector<1x64xf32> to vector<8x64xf32>
    %147 = arith.addf %144, %146 : vector<8x64xf32>
    %cst_59 = arith.constant 0.000000e+00 : f32
    %148 = vector.broadcast %cst_59 : f32 to vector<8x64xf32>
    %149 = arith.maximumf %147, %148 : vector<8x64xf32>
    %c0_60 = arith.constant 0 : index
    %c0_61 = arith.constant 0 : index
    %150 = vector.load %arg6[%c0_60, %c0_61] : memref<64x8xf32, #tpu.memory_space<vmem>>, vector<64x8xf32>
    %cst_62 = arith.constant dense<0.000000e+00> : vector<8x8xf32>
    %151 = tpu.matmul %149, %150, %cst_62 {dimension_numbers = #tpu.dot_dimension_numbers<[1], [0], [0], [1], [0, 0, 1, 1], [], []>} : vector<8x64xf32>, vector<64x8xf32>, vector<8x8xf32> -> vector<8x8xf32>
    %c0_63 = arith.constant 0 : index
    %c0_64 = arith.constant 0 : index
    %152 = vector.load %arg7[%c0_63, %c0_64] : memref<1x8xf32, #tpu.memory_space<vmem>>, vector<1x8xf32>
    %153 = vector.broadcast %152 : vector<1x8xf32> to vector<8x8xf32>
    %154 = arith.addf %151, %153 : vector<8x8xf32>
    %cst_65 = arith.constant 0.000000e+00 : f32
    %155 = vector.broadcast %cst_65 : f32 to vector<8x8xf32>
    %156 = arith.maximumf %154, %155 : vector<8x8xf32>
    %c2_66 = arith.constant 2 : index
    %c0_67 = arith.constant 0 : index
    %157 = vector.load %arg8[%c2_66, %c0_67] : memref<4x8xf32, #tpu.memory_space<vmem>>, vector<1x8xf32>
    %158 = vector.shape_cast %157 : vector<1x8xf32> to vector<8xf32>
    %159 = vector.shape_cast %158 : vector<8xf32> to vector<1x8xf32>
    %160 = vector.broadcast %159 : vector<1x8xf32> to vector<8x8xf32>
    %161 = arith.mulf %156, %160 : vector<8x8xf32>
    %162 = arith.addf %110, %161 : vector<8x8xf32>
    %c15 = arith.constant 15 : index
    %c0_68 = arith.constant 0 : index
    %163 = vector.load %arg2[%c15, %c0_68] : memref<20x516xf32, #tpu.memory_space<vmem>>, vector<1x516xf32>
    %164 = vector.broadcast %163 : vector<1x516xf32> to vector<8x516xf32>
    %165 = arith.mulf %1, %164 : vector<8x516xf32>
    %c16 = arith.constant 16 : index
    %c0_69 = arith.constant 0 : index
    %166 = vector.load %arg2[%c16, %c0_69] : memref<20x516xf32, #tpu.memory_space<vmem>>, vector<1x516xf32>
    %167 = vector.broadcast %166 : vector<1x516xf32> to vector<8x516xf32>
    %168 = arith.mulf %2, %167 : vector<8x516xf32>
    %169 = arith.addf %165, %168 : vector<8x516xf32>
    %c17 = arith.constant 17 : index
    %c0_70 = arith.constant 0 : index
    %170 = vector.load %arg2[%c17, %c0_70] : memref<20x516xf32, #tpu.memory_space<vmem>>, vector<1x516xf32>
    %171 = vector.broadcast %170 : vector<1x516xf32> to vector<8x516xf32>
    %172 = arith.mulf %3, %171 : vector<8x516xf32>
    %173 = arith.addf %169, %172 : vector<8x516xf32>
    %c18 = arith.constant 18 : index
    %c0_71 = arith.constant 0 : index
    %174 = vector.load %arg2[%c18, %c0_71] : memref<20x516xf32, #tpu.memory_space<vmem>>, vector<1x516xf32>
    %175 = vector.broadcast %174 : vector<1x516xf32> to vector<8x516xf32>
    %176 = arith.mulf %4, %175 : vector<8x516xf32>
    %177 = arith.addf %173, %176 : vector<8x516xf32>
    %c19 = arith.constant 19 : index
    %c0_72 = arith.constant 0 : index
    %178 = vector.load %arg2[%c19, %c0_72] : memref<20x516xf32, #tpu.memory_space<vmem>>, vector<1x516xf32>
    %179 = vector.broadcast %178 : vector<1x516xf32> to vector<8x516xf32>
    %180 = arith.mulf %5, %179 : vector<8x516xf32>
    %181 = arith.addf %177, %180 : vector<8x516xf32>
    %c3_73 = arith.constant 3 : index
    %c0_74 = arith.constant 0 : index
    %182 = vector.load %arg3[%c3_73, %c0_74] : memref<4x516xf32, #tpu.memory_space<vmem>>, vector<1x516xf32>
    %183 = vector.broadcast %182 : vector<1x516xf32> to vector<8x516xf32>
    %184 = arith.addf %181, %183 : vector<8x516xf32>
    %cst_75 = arith.constant 0.000000e+00 : f32
    %185 = vector.broadcast %cst_75 : f32 to vector<8x516xf32>
    %186 = arith.maximumf %184, %185 : vector<8x516xf32>
    %187 = vector.extract_strided_slice %186 {offsets = [0, 0], sizes = [8, 514], strides = [1, 1]} : vector<8x516xf32> to vector<8x514xf32>
    %188 = vector.extract_strided_slice %186 {offsets = [0, 1], sizes = [8, 514], strides = [1, 1]} : vector<8x516xf32> to vector<8x514xf32>
    %189 = arith.maximumf %187, %188 : vector<8x514xf32>
    %190 = vector.extract_strided_slice %189 {offsets = [0, 0], sizes = [8, 512], strides = [1, 1]} : vector<8x514xf32> to vector<8x512xf32>
    %191 = vector.extract_strided_slice %189 {offsets = [0, 2], sizes = [8, 512], strides = [1, 1]} : vector<8x514xf32> to vector<8x512xf32>
    %192 = arith.maximumf %190, %191 : vector<8x512xf32>
    %193 = vector.extract_strided_slice %186 {offsets = [0, 4], sizes = [8, 512], strides = [1, 1]} : vector<8x516xf32> to vector<8x512xf32>
    %194 = arith.maximumf %192, %193 : vector<8x512xf32>
    %c0_76 = arith.constant 0 : index
    %c0_77 = arith.constant 0 : index
    %195 = vector.load %arg4[%c0_76, %c0_77] : memref<512x64xf32, #tpu.memory_space<vmem>>, vector<512x64xf32>
    %cst_78 = arith.constant dense<0.000000e+00> : vector<8x64xf32>
    %196 = tpu.matmul %194, %195, %cst_78 {dimension_numbers = #tpu.dot_dimension_numbers<[1], [0], [0], [1], [0, 0, 1, 1], [], []>} : vector<8x512xf32>, vector<512x64xf32>, vector<8x64xf32> -> vector<8x64xf32>
    %c0_79 = arith.constant 0 : index
    %c0_80 = arith.constant 0 : index
    %197 = vector.load %arg5[%c0_79, %c0_80] : memref<1x64xf32, #tpu.memory_space<vmem>>, vector<1x64xf32>
    %198 = vector.broadcast %197 : vector<1x64xf32> to vector<8x64xf32>
    %199 = arith.addf %196, %198 : vector<8x64xf32>
    %cst_81 = arith.constant 0.000000e+00 : f32
    %200 = vector.broadcast %cst_81 : f32 to vector<8x64xf32>
    %201 = arith.maximumf %199, %200 : vector<8x64xf32>
    %c0_82 = arith.constant 0 : index
    %c0_83 = arith.constant 0 : index
    %202 = vector.load %arg6[%c0_82, %c0_83] : memref<64x8xf32, #tpu.memory_space<vmem>>, vector<64x8xf32>
    %cst_84 = arith.constant dense<0.000000e+00> : vector<8x8xf32>
    %203 = tpu.matmul %201, %202, %cst_84 {dimension_numbers = #tpu.dot_dimension_numbers<[1], [0], [0], [1], [0, 0, 1, 1], [], []>} : vector<8x64xf32>, vector<64x8xf32>, vector<8x8xf32> -> vector<8x8xf32>
    %c0_85 = arith.constant 0 : index
    %c0_86 = arith.constant 0 : index
    %204 = vector.load %arg7[%c0_85, %c0_86] : memref<1x8xf32, #tpu.memory_space<vmem>>, vector<1x8xf32>
    %205 = vector.broadcast %204 : vector<1x8xf32> to vector<8x8xf32>
    %206 = arith.addf %203, %205 : vector<8x8xf32>
    %cst_87 = arith.constant 0.000000e+00 : f32
    %207 = vector.broadcast %cst_87 : f32 to vector<8x8xf32>
    %208 = arith.maximumf %206, %207 : vector<8x8xf32>
    %c3_88 = arith.constant 3 : index
    %c0_89 = arith.constant 0 : index
    %209 = vector.load %arg8[%c3_88, %c0_89] : memref<4x8xf32, #tpu.memory_space<vmem>>, vector<1x8xf32>
    %210 = vector.shape_cast %209 : vector<1x8xf32> to vector<8xf32>
    %211 = vector.shape_cast %210 : vector<8xf32> to vector<1x8xf32>
    %212 = vector.broadcast %211 : vector<1x8xf32> to vector<8x8xf32>
    %213 = arith.mulf %208, %212 : vector<8x8xf32>
    %214 = arith.addf %162, %213 : vector<8x8xf32>
    %cst_90 = arith.constant dense<0.000000e+00> : vector<8xf32>
    %215 = vector.multi_reduction <add>, %214, %cst_90 [1] : vector<8x8xf32> to vector<8xf32>
    %216 = vector.shape_cast %215 : vector<8xf32> to vector<8x1xf32>
    %c0_91 = arith.constant 0 : index
    %217 = memref.load %arg9[%c0_91] : memref<1xf32, #tpu.memory_space<smem>>
    %218 = vector.broadcast %217 : f32 to vector<8x1xf32>
    %219 = arith.addf %216, %218 : vector<8x1xf32>
    %c0_92 = arith.constant 0 : index
    %c0_93 = arith.constant 0 : index
    %220 = vector.load %arg10[%c0_92, %c0_93] : memref<8x1xf32, #tpu.memory_space<vmem>>, vector<8x1xf32>
    tpu.vector_store %arg10[%c0_92, %c0_93], %219 {strides = array<i32>} : memref<8x1xf32, #tpu.memory_space<vmem>>, vector<8x1xf32>,
    return
  }
  func.func @transform_0(%arg0: i32) -> (i32, i32) {
    %c0_i32 = arith.constant 0 : i32
    %c0_i32_0 = arith.constant 0 : i32
    return %arg0, %c0_i32 : i32, i32
  }
  func.func @transform_1(%arg0: i32) -> (i32, i32) {
    %c0_i32 = arith.constant 0 : i32
    %c0_i32_0 = arith.constant 0 : i32
    %c0_i32_1 = arith.constant 0 : i32
    return %c0_i32, %c0_i32_0 : i32, i32
  }
  func.func @transform_2(%arg0: i32) -> (i32, i32) {
    %c0_i32 = arith.constant 0 : i32
    %c0_i32_0 = arith.constant 0 : i32
    %c0_i32_1 = arith.constant 0 : i32
    return %c0_i32, %c0_i32_0 : i32, i32
  }
  func.func @transform_3(%arg0: i32) -> (i32, i32) {
    %c0_i32 = arith.constant 0 : i32
    %c0_i32_0 = arith.constant 0 : i32
    %c0_i32_1 = arith.constant 0 : i32
    return %c0_i32, %c0_i32_0 : i32, i32
  }
  func.func @transform_4(%arg0: i32) -> (i32, i32) {
    %c0_i32 = arith.constant 0 : i32
    %c0_i32_0 = arith.constant 0 : i32
    %c0_i32_1 = arith.constant 0 : i32
    return %c0_i32, %c0_i32_0 : i32, i32
  }
  func.func @transform_5(%arg0: i32) -> (i32, i32) {
    %c0_i32 = arith.constant 0 : i32
    %c0_i32_0 = arith.constant 0 : i32
    %c0_i32_1 = arith.constant 0 : i32
    return %c0_i32, %c0_i32_0 : i32, i32
  }
  func.func @transform_6(%arg0: i32) -> (i32, i32) {
    %c0_i32 = arith.constant 0 : i32
    %c0_i32_0 = arith.constant 0 : i32
    %c0_i32_1 = arith.constant 0 : i32
    return %c0_i32, %c0_i32_0 : i32, i32
  }
  func.func @transform_7(%arg0: i32) -> (i32, i32) {
    %c0_i32 = arith.constant 0 : i32
    %c0_i32_0 = arith.constant 0 : i32
    %c0_i32_1 = arith.constant 0 : i32
    return %c0_i32, %c0_i32_0 : i32, i32
  }
  func.func @transform_8(%arg0: i32) -> i32 {
    %c0_i32 = arith.constant 0 : i32
    %c0_i32_0 = arith.constant 0 : i32
    return %c0_i32 : i32
  }
  func.func @transform_9(%arg0: i32) -> (i32, i32) {
    %c0_i32 = arith.constant 0 : i32
    %c0_i32_0 = arith.constant 0 : i32
    return %arg0, %c0_i32 : i32, i32
  }
}

</mosaic_0001>

<llo_original>
// kernel: tpu_custom_call.1
$region0: #{tpu_custom_call.1}
  #allocation0 [shape = 'u32[]', space=smem, size = 0x4, offset = 0x4, fixed_abs, tag = 'smem constant byte address 0x4 - core index']
  #allocation1 [shape = 'u32[144,128]{1,0:T(1,128)}', space=vmem, size = 0x12000, scoped, tag = 'internal scratch']
  #allocation2 [shape = 'f32[1]{0:T(128)S(6)}', space=smem, size = 0x200, scoped, tag = 'scoped memory for tpu_custom_call.1']
  %s0 = inlined_call_operand.vmem [shape: f32[8,520], index: 0, kind: input, shape index: {}]
  %s1 = inlined_call_operand.vmem [shape: f32[20,516], index: 1, kind: input, shape index: {}]
  %s2 = inlined_call_operand.vmem [shape: f32[4,516], index: 2, kind: input, shape index: {}]
  %s3 = inlined_call_operand.vmem [shape: f32[512,64], index: 3, kind: input, shape index: {}]
  %s4 = inlined_call_operand.vmem [shape: f32[1,64], index: 4, kind: input, shape index: {}]
  %s5 = inlined_call_operand.vmem [shape: f32[64,8], index: 5, kind: input, shape index: {}]
  %s6 = inlined_call_operand.vmem [shape: f32[1,8], index: 6, kind: input, shape index: {}]
  %s7 = inlined_call_operand.vmem [shape: f32[4,8], index: 7, kind: input, shape index: {}]
  %s8 = inlined_call_operand.<no memory space> [shape: f32[1], index: 8, kind: input, shape index: {}]
  %s9 = inlined_call_operand.vmem [shape: f32[8,1], index: 9, kind: output, shape index: {}]
  %s10 = sld [smem:[#allocation0]]
  $region46: #{tpu_custom_call.1} parent=0
    _
  %s12 = ssub.s32 1, %s10
  %s13 = scalar_select 0, %s12, %s10
  %14 = sst [smem:[#allocation2]] %s8
  // Predicated region
  $region2: #{tpu_custom_call.1} parent=0 // pred_check
    _
  $region3: #{tpu_custom_call.1} parent=0 // pred_check_branch
    %16 = sbr.rel (0) target = $region5
  $region4: #{tpu_custom_call.1} parent=0 // pred_region
    _
  $region5: #{tpu_custom_call.1} parent=0 // pred_fallthru
    _
  // Predicated region
  $region6: #{tpu_custom_call.1} parent=0 // pred_check
    _
  $region7: #{tpu_custom_call.1} parent=0 // pred_check_branch
    %18 = sbr.rel (0) target = $region9
  $region8: #{tpu_custom_call.1} parent=0 // pred_region
    _
  $region9: #{tpu_custom_call.1} parent=0 // pred_fallthru
    _
  // Predicated region
  $region10: #{tpu_custom_call.1} parent=0 // pred_check
    _
  $region11: #{tpu_custom_call.1} parent=0 // pred_check_branch
    %20 = sbr.rel (0) target = $region13
  $region12: #{tpu_custom_call.1} parent=0 // pred_region
    _
  $region13: #{tpu_custom_call.1} parent=0 // pred_fallthru
    _
  // Predicated region
  $region14: #{tpu_custom_call.1} parent=0 // pred_check
    _
  $region15: #{tpu_custom_call.1} parent=0 // pred_check_branch
    %22 = sbr.rel (0) target = $region17
  $region16: #{tpu_custom_call.1} parent=0 // pred_region
    _
  $region17: #{tpu_custom_call.1} parent=0 // pred_fallthru
    _
  // Predicated region
  $region18: #{tpu_custom_call.1} parent=0 // pred_check
    _
  $region19: #{tpu_custom_call.1} parent=0 // pred_check_branch
    %24 = sbr.rel (0) target = $region21
  $region20: #{tpu_custom_call.1} parent=0 // pred_region
    _
  $region21: #{tpu_custom_call.1} parent=0 // pred_fallthru
    _
  // Predicated region
  $region22: #{tpu_custom_call.1} parent=0 // pred_check
    _
  $region23: #{tpu_custom_call.1} parent=0 // pred_check_branch
    %26 = sbr.rel (0) target = $region25
  $region24: #{tpu_custom_call.1} parent=0 // pred_region
    _
  $region25: #{tpu_custom_call.1} parent=0 // pred_fallthru
    _
  // Predicated region
  $region26: #{tpu_custom_call.1} parent=0 // pred_check
    _
  $region27: #{tpu_custom_call.1} parent=0 // pred_check_branch
    %28 = sbr.rel (0) target = $region29
  $region28: #{tpu_custom_call.1} parent=0 // pred_region
    _
  $region29: #{tpu_custom_call.1} parent=0 // pred_fallthru
    _
  // Predicated region
  $region30: #{tpu_custom_call.1} parent=0 // pred_check
    _
  $region31: #{tpu_custom_call.1} parent=0 // pred_check_branch
    %30 = sbr.rel (0) target = $region33
  $region32: #{tpu_custom_call.1} parent=0 // pred_region
    _
  $region33: #{tpu_custom_call.1} parent=0 // pred_fallthru
    _
  // Predicated region
  $region34: #{tpu_custom_call.1} parent=0 // pred_check
    _
  $region35: #{tpu_custom_call.1} parent=0 // pred_check_branch
    %32 = sbr.rel (0) target = $region37
  $region36: #{tpu_custom_call.1} parent=0 // pred_region
    _
  $region37: #{tpu_custom_call.1} parent=0 // pred_fallthru
    _
  %v33 = vld [vmem:[%s0] sm:$0xff]
  %v34 = vld [vmem:[%s0 + $0x8] sm:$0xff]
  %v35 = vld [vmem:[%s0 + $0x10] sm:$0xff]
  %v36 = vld [vmem:[%s0 + $0x18] sm:$0xff]
  %v37 = vld [vmem:[%s0 + $0x20] sm:$0xff]
  %v38 = vld [vmem:[%s1] ss:$8 sm:$0xf]
  %v39 = vld [vmem:[%s1] ss:$8 sm:$0x10]
  %v40 = vor.u32 %v38, %v39
  %v42 = vlaneseq
  %v43 = vshrl.u32 %v42, 7
  %v44 = vsub.s32 0, %v43
  %v45 = vrot.slane %v40, %v44
  %v46 = vlaneseq
  %v47 = vshrl.u32 %v46, 7
  %v48 = vsub.s32 1, %v47
  %v49 = vrot.slane %v40, %v48
  %v50 = vlaneseq
  %v51 = vshrl.u32 %v50, 7
  %v52 = vsub.s32 2, %v51
  %v53 = vrot.slane %v40, %v52
  %v54 = vlaneseq
  %v55 = vshrl.u32 %v54, 7
  %v56 = vsub.s32 3, %v55
  %v57 = vrot.slane %v40, %v56
  %v58 = vlaneseq
  %v59 = vshrl.u32 %v58, 7
  %v60 = vsub.s32 4, %v59
  %v61 = vrot.slane %v40, %v60
  %v67 = vmul.f32 %v33, %v45
  %v68 = vmul.f32 %v34, %v49
  %v69 = vmul.f32 %v35, %v53
  %v70 = vmul.f32 %v36, %v57
  %v71 = vmul.f32 %v37, %v61
  %s72 = scalar_lea.vmem %s1, 1
  %v73 = vld [vmem:[%s72] ss:$8 sm:$0xf]
  %v74 = vld [vmem:[%s72] ss:$8 sm:$0x10]
  %v75 = vor.u32 %v73, %v74
  %v77 = vlaneseq
  %v78 = vshrl.u32 %v77, 7
  %v79 = vsub.s32 0, %v78
  %v80 = vrot.slane %v75, %v79
  %v81 = vlaneseq
  %v82 = vshrl.u32 %v81, 7
  %v83 = vsub.s32 1, %v82
  %v84 = vrot.slane %v75, %v83
  %v85 = vlaneseq
  %v86 = vshrl.u32 %v85, 7
  %v87 = vsub.s32 2, %v86
  %v88 = vrot.slane %v75, %v87
  %v89 = vlaneseq
  %v90 = vshrl.u32 %v89, 7
  %v91 = vsub.s32 3, %v90
  %v92 = vrot.slane %v75, %v91
  %v93 = vlaneseq
  %v94 = vshrl.u32 %v93, 7
  %v95 = vsub.s32 4, %v94
  %v96 = vrot.slane %v75, %v95
  %97 = vrot.lane.b32.xlu0 %v80, 1
  %v98 = vpop.permute.xlu0 %97
  %99 = vrot.lane.b32.xlu0 %v84, 1
  %v100 = vpop.permute.xlu0 %99
  %101 = vrot.lane.b32.xlu0 %v88, 1
  %v102 = vpop.permute.xlu0 %101
  %103 = vrot.lane.b32.xlu0 %v92, 1
  %v104 = vpop.permute.xlu0 %103
  %105 = vrot.lane.b32.xlu0 %v96, 1
  %v106 = vpop.permute.xlu0 %105
  %vm107 = vcmask 7168
  %v108 = vsel %vm107, %v98, %v100
  %v109 = vsel %vm107, %v100, %v102
  %v110 = vsel %vm107, %v102, %v104
  %v111 = vsel %vm107, %v104, %v106
  %v117 = vmul.f32 %v33, %v98
  %v118 = vmul.f32 %v34, %v108
  %v119 = vmul.f32 %v35, %v109
  %v120 = vmul.f32 %v36, %v110
  %v121 = vmul.f32 %v37, %v111
  %127 = vrot.lane.b32.xlu0 %v117, 127
  %v128 = vpop.permute.xlu0 %127
  %129 = vrot.lane.b32.xlu0 %v118, 127
  %v130 = vpop.permute.xlu0 %129
  %131 = vrot.lane.b32.xlu0 %v119, 127
  %v132 = vpop.permute.xlu0 %131
  %133 = vrot.lane.b32.xlu0 %v120, 127
  %v134 = vpop.permute.xlu0 %133
  %135 = vrot.lane.b32.xlu0 %v121, 127
  %v136 = vpop.permute.xlu0 %135
  %vm137 = vcmask 1039360
  %v138 = vsel %vm137, %v128, %v130
  %v139 = vsel %vm137, %v130, %v132
  %v140 = vsel %vm137, %v132, %v134
  %v141 = vsel %vm137, %v134, %v136
  %v147 = vadd.f32 %v67, %v138
  %v148 = vadd.f32 %v68, %v139
  %v149 = vadd.f32 %v69, %v140
  %v150 = vadd.f32 %v70, %v141
  %v151 = vadd.f32 %v71, %v136
  %s152 = scalar_lea.vmem %s1, 2
  %v153 = vld [vmem:[%s152] ss:$8 sm:$0xf]
  %v154 = vld [vmem:[%s152] ss:$8 sm:$0x10]
  %v155 = vor.u32 %v153, %v154
  %v157 = vlaneseq
  %v158 = vshrl.u32 %v157, 7
  %v159 = vsub.s32 0, %v158
  %v160 = vrot.slane %v155, %v159
  %v161 = vlaneseq
  %v162 = vshrl.u32 %v161, 7
  %v163 = vsub.s32 1, %v162
  %v164 = vrot.slane %v155, %v163
  %v165 = vlaneseq
  %v166 = vshrl.u32 %v165, 7
  %v167 = vsub.s32 2, %v166
  %v168 = vrot.slane %v155, %v167
  %v169 = vlaneseq
  %v170 = vshrl.u32 %v169, 7
  %v171 = vsub.s32 3, %v170
  %v172 = vrot.slane %v155, %v171
  %v173 = vlaneseq
  %v174 = vshrl.u32 %v173, 7
  %v175 = vsub.s32 4, %v174
  %v176 = vrot.slane %v155, %v175
  %177 = vrot.lane.b32.xlu0 %v160, 2
  %v178 = vpop.permute.xlu0 %177
  %179 = vrot.lane.b32.xlu0 %v164, 2
  %v180 = vpop.permute.xlu0 %179
  %181 = vrot.lane.b32.xlu0 %v168, 2
  %v182 = vpop.permute.xlu0 %181
  %183 = vrot.lane.b32.xlu0 %v172, 2
  %v184 = vpop.permute.xlu0 %183
  %185 = vrot.lane.b32.xlu0 %v176, 2
  %v186 = vpop.permute.xlu0 %185
  %vm187 = vcmask 15360
  %v188 = vsel %vm187, %v178, %v180
  %v189 = vsel %vm187, %v180, %v182
  %v190 = vsel %vm187, %v182, %v184
  %v191 = vsel %vm187, %v184, %v186
  %v197 = vmul.f32 %v33, %v178
  %v198 = vmul.f32 %v34, %v188
  %v199 = vmul.f32 %v35, %v189
  %v200 = vmul.f32 %v36, %v190
  %v201 = vmul.f32 %v37, %v191
  %207 = vrot.lane.b32.xlu0 %v197, 126
  %v208 = vpop.permute.xlu0 %207
  %209 = vrot.lane.b32.xlu0 %v198, 126
  %v210 = vpop.permute.xlu0 %209
  %211 = vrot.lane.b32.xlu0 %v199, 126
  %v212 = vpop.permute.xlu0 %211
  %213 = vrot.lane.b32.xlu0 %v200, 126
  %v214 = vpop.permute.xlu0 %213
  %215 = vrot.lane.b32.xlu0 %v201, 126
  %v216 = vpop.permute.xlu0 %215
  %vm217 = vcmask 1031168
  %v218 = vsel %vm217, %v208, %v210
  %v219 = vsel %vm217, %v210, %v212
  %v220 = vsel %vm217, %v212, %v214
  %v221 = vsel %vm217, %v214, %v216
  %v227 = vadd.f32 %v147, %v218
  %v228 = vadd.f32 %v148, %v219
  %v229 = vadd.f32 %v149, %v220
  %v230 = vadd.f32 %v150, %v221
  %v231 = vadd.f32 %v151, %v216
  %s232 = scalar_lea.vmem %s1, 3
  %v233 = vld [vmem:[%s232] ss:$8 sm:$0xf]
  %v234 = vld [vmem:[%s232] ss:$8 sm:$0x10]
  %v235 = vor.u32 %v233, %v234
  %v237 = vlaneseq
  %v238 = vshrl.u32 %v237, 7
  %v239 = vsub.s32 0, %v238
  %v240 = vrot.slane %v235, %v239
  %v241 = vlaneseq
  %v242 = vshrl.u32 %v241, 7
  %v243 = vsub.s32 1, %v242
  %v244 = vrot.slane %v235, %v243
  %v245 = vlaneseq
  %v246 = vshrl.u32 %v245, 7
  %v247 = vsub.s32 2, %v246
  %v248 = vrot.slane %v235, %v247
  %v249 = vlaneseq
  %v250 = vshrl.u32 %v249, 7
  %v251 = vsub.s32 3, %v250
  %v252 = vrot.slane %v235, %v251
  %v253 = vlaneseq
  %v254 = vshrl.u32 %v253, 7
  %v255 = vsub.s32 4, %v254
  %v256 = vrot.slane %v235, %v255
  %257 = vrot.lane.b32.xlu0 %v240, 3
  %v258 = vpop.permute.xlu0 %257
  %259 = vrot.lane.b32.xlu0 %v244, 3
  %v260 = vpop.permute.xlu0 %259
  %261 = vrot.lane.b32.xlu0 %v248, 3
  %v262 = vpop.permute.xlu0 %261
  %263 = vrot.lane.b32.xlu0 %v252, 3
  %v264 = vpop.permute.xlu0 %263
  %265 = vrot.lane.b32.xlu0 %v256, 3
  %v266 = vpop.permute.xlu0 %265
  %vm267 = vcmask 23552
  %v268 = vsel %vm267, %v258, %v260
  %v269 = vsel %vm267, %v260, %v262
  %v270 = vsel %vm267, %v262, %v264
  %v271 = vsel %vm267, %v264, %v266
  %v277 = vmul.f32 %v33, %v258
  %v278 = vmul.f32 %v34, %v268
  %v279 = vmul.f32 %v35, %v269
  %v280 = vmul.f32 %v36, %v270
  %v281 = vmul.f32 %v37, %v271
  %287 = vrot.lane.b32.xlu0 %v277, 125
  %v288 = vpop.permute.xlu0 %287
  %289 = vrot.lane.b32.xlu0 %v278, 125
  %v290 = vpop.permute.xlu0 %289
  %291 = vrot.lane.b32.xlu0 %v279, 125
  %v292 = vpop.permute.xlu0 %291
  %293 = vrot.lane.b32.xlu0 %v280, 125
  %v294 = vpop.permute.xlu0 %293
  %295 = vrot.lane.b32.xlu0 %v281, 125
  %v296 = vpop.permute.xlu0 %295
  %vm297 = vcmask 1022976
  %v298 = vsel %vm297, %v288, %v290
  %v299 = vsel %vm297, %v290, %v292
  %v300 = vsel %vm297, %v292, %v294
  %v301 = vsel %vm297, %v294, %v296
  %v307 = vadd.f32 %v227, %v298
  %v308 = vadd.f32 %v228, %v299
  %v309 = vadd.f32 %v229, %v300
  %v310 = vadd.f32 %v230, %v301
  %v311 = vadd.f32 %v231, %v296
  %s312 = scalar_lea.vmem %s1, 4
  %v313 = vld [vmem:[%s312] ss:$8 sm:$0xf]
  %v314 = vld [vmem:[%s312] ss:$8 sm:$0x10]
  %v315 = vor.u32 %v313, %v314
  %v317 = vlaneseq
  %v318 = vshrl.u32 %v317, 7
  %v319 = vsub.s32 0, %v318
  %v320 = vrot.slane %v315, %v319
  %v321 = vlaneseq
  %v322 = vshrl.u32 %v321, 7
  %v323 = vsub.s32 1, %v322
  %v324 = vrot.slane %v315, %v323
  %v325 = vlaneseq
  %v326 = vshrl.u32 %v325, 7
  %v327 = vsub.s32 2, %v326
  %v328 = vrot.slane %v315, %v327
  %v329 = vlaneseq
  %v330 = vshrl.u32 %v329, 7
  %v331 = vsub.s32 3, %v330
  %v332 = vrot.slane %v315, %v331
  %v333 = vlaneseq
  %v334 = vshrl.u32 %v333, 7
  %v335 = vsub.s32 4, %v334
  %v336 = vrot.slane %v315, %v335
  %337 = vrot.lane.b32.xlu0 %v320, 4
  %v338 = vpop.permute.xlu0 %337
  %339 = vrot.lane.b32.xlu0 %v324, 4
  %v340 = vpop.permute.xlu0 %339
  %341 = vrot.lane.b32.xlu0 %v328, 4
  %v342 = vpop.permute.xlu0 %341
  %343 = vrot.lane.b32.xlu0 %v332, 4
  %v344 = vpop.permute.xlu0 %343
  %345 = vrot.lane.b32.xlu0 %v336, 4
  %v346 = vpop.permute.xlu0 %345
  %vm347 = vcmask 31744
  %v348 = vsel %vm347, %v338, %v340
  %v349 = vsel %vm347, %v340, %v342
  %v350 = vsel %vm347, %v342, %v344
  %v351 = vsel %vm347, %v344, %v346
  %v357 = vmul.f32 %v33, %v338
  %v358 = vmul.f32 %v34, %v348
  %v359 = vmul.f32 %v35, %v349
  %v360 = vmul.f32 %v36, %v350
  %v361 = vmul.f32 %v37, %v351
  %367 = vrot.lane.b32.xlu0 %v357, 124
  %v368 = vpop.permute.xlu0 %367
  %369 = vrot.lane.b32.xlu0 %v358, 124
  %v370 = vpop.permute.xlu0 %369
  %371 = vrot.lane.b32.xlu0 %v359, 124
  %v372 = vpop.permute.xlu0 %371
  %373 = vrot.lane.b32.xlu0 %v360, 124
  %v374 = vpop.permute.xlu0 %373
  %375 = vrot.lane.b32.xlu0 %v361, 124
  %v376 = vpop.permute.xlu0 %375
  %vm377 = vcmask 1014784
  %v378 = vsel %vm377, %v368, %v370
  %v379 = vsel %vm377, %v370, %v372
  %v380 = vsel %vm377, %v372, %v374
  %v381 = vsel %vm377, %v374, %v376
  %v387 = vadd.f32 %v307, %v378
  %v388 = vadd.f32 %v308, %v379
  %v389 = vadd.f32 %v309, %v380
  %v390 = vadd.f32 %v310, %v381
  %v391 = vadd.f32 %v311, %v376
  %v392 = vld [vmem:[%s2] ss:$4 sm:$0x1f]
  %v394 = vlaneseq
  %v395 = vshrl.u32 %v394, 7
  %v396 = vsub.s32 0, %v395
  %v397 = vrot.slane %v392, %v396
  %v398 = vlaneseq
  %v399 = vshrl.u32 %v398, 7
  %v400 = vsub.s32 1, %v399
  %v401 = vrot.slane %v392, %v400
  %v402 = vlaneseq
  %v403 = vshrl.u32 %v402, 7
  %v404 = vsub.s32 2, %v403
  %v405 = vrot.slane %v392, %v404
  %v406 = vlaneseq
  %v407 = vshrl.u32 %v406, 7
  %v408 = vsub.s32 3, %v407
  %v409 = vrot.slane %v392, %v408
  %v410 = vlaneseq
  %v411 = vshrl.u32 %v410, 7
  %v412 = vsub.s32 4, %v411
  %v413 = vrot.slane %v392, %v412
  %v419 = vadd.f32 %v387, %v397
  %v420 = vadd.f32 %v388, %v401
  %v421 = vadd.f32 %v389, %v405
  %v422 = vadd.f32 %v390, %v409
  %v423 = vadd.f32 %v391, %v413
  %v424 = vmax.f32 %v419, 0.0
  %v425 = vmax.f32 %v420, 0.0
  %v426 = vmax.f32 %v421, 0.0
  %v427 = vmax.f32 %v422, 0.0
  %v428 = vmax.f32 %v423, 0.0
  %434 = vrot.lane.b32.xlu0 %v424, 127
  %v435 = vpop.permute.xlu0 %434
  %436 = vrot.lane.b32.xlu0 %v425, 127
  %v437 = vpop.permute.xlu0 %436
  %438 = vrot.lane.b32.xlu0 %v426, 127
  %v439 = vpop.permute.xlu0 %438
  %440 = vrot.lane.b32.xlu0 %v427, 127
  %v441 = vpop.permute.xlu0 %440
  %442 = vrot.lane.b32.xlu0 %v428, 127
  %v443 = vpop.permute.xlu0 %442
  %v444 = vsel %vm137, %v435, %v437
  %v445 = vsel %vm137, %v437, %v439
  %v446 = vsel %vm137, %v439, %v441
  %v447 = vsel %vm137, %v441, %v443
  %v453 = vmax.f32 %v424, %v444
  %v454 = vmax.f32 %v425, %v445
  %v455 = vmax.f32 %v426, %v446
  %v456 = vmax.f32 %v427, %v447
  %v457 = vmax.f32 %v428, %v443
  %463 = vrot.lane.b32.xlu0 %v453, 126
  %v464 = vpop.permute.xlu0 %463
  %465 = vrot.lane.b32.xlu0 %v454, 126
  %v466 = vpop.permute.xlu0 %465
  %467 = vrot.lane.b32.xlu0 %v455, 126
  %v468 = vpop.permute.xlu0 %467
  %469 = vrot.lane.b32.xlu0 %v456, 126
  %v470 = vpop.permute.xlu0 %469
  %471 = vrot.lane.b32.xlu0 %v457, 126
  %v472 = vpop.permute.xlu0 %471
  %v473 = vsel %vm217, %v464, %v466
  %v474 = vsel %vm217, %v466, %v468
  %v475 = vsel %vm217, %v468, %v470
  %v476 = vsel %vm217, %v470, %v472
  %v481 = vmax.f32 %v453, %v473
  %v482 = vmax.f32 %v454, %v474
  %v483 = vmax.f32 %v455, %v475
  %v484 = vmax.f32 %v456, %v476
  %485 = vrot.lane.b32.xlu0 %v424, 124
  %v486 = vpop.permute.xlu0 %485
  %487 = vrot.lane.b32.xlu0 %v425, 124
  %v488 = vpop.permute.xlu0 %487
  %489 = vrot.lane.b32.xlu0 %v426, 124
  %v490 = vpop.permute.xlu0 %489
  %491 = vrot.lane.b32.xlu0 %v427, 124
  %v492 = vpop.permute.xlu0 %491
  %493 = vrot.lane.b32.xlu0 %v428, 124
  %v494 = vpop.permute.xlu0 %493
  %v495 = vsel %vm377, %v486, %v488
  %v496 = vsel %vm377, %v488, %v490
  %v497 = vsel %vm377, %v490, %v492
  %v498 = vsel %vm377, %v492, %v494
  %v503 = vmax.f32 %v481, %v495
  %v504 = vmax.f32 %v482, %v496
  %v505 = vmax.f32 %v483, %v497
  %v506 = vmax.f32 %v484, %v498
  %v507 = vld [vmem:[%s3] sm:$0xff]
  %v508 = vld [vmem:[%s3 + $0x8] sm:$0xff]
  %v509 = vld [vmem:[%s3 + $0x10] sm:$0xff]
  %v510 = vld [vmem:[%s3 + $0x18] sm:$0xff]
  %v511 = vld [vmem:[%s3 + $0x20] sm:$0xff]
  %v512 = vld [vmem:[%s3 + $0x28] sm:$0xff]
  %v513 = vld [vmem:[%s3 + $0x30] sm:$0xff]
  %v514 = vld [vmem:[%s3 + $0x38] sm:$0xff]
  %v515 = vld [vmem:[%s3 + $0x40] sm:$0xff]
  %v516 = vld [vmem:[%s3 + $0x48] sm:$0xff]
  %v517 = vld [vmem:[%s3 + $0x50] sm:$0xff]
  %v518 = vld [vmem:[%s3 + $0x58] sm:$0xff]
  %v519 = vld [vmem:[%s3 + $0x60] sm:$0xff]
  %v520 = vld [vmem:[%s3 + $0x68] sm:$0xff]
  %v521 = vld [vmem:[%s3 + $0x70] sm:$0xff]
  %v522 = vld [vmem:[%s3 + $0x78] sm:$0xff]
  %v523 = vld [vmem:[%s3 + $0x80] sm:$0xff]
  %v524 = vld [vmem:[%s3 + $0x88] sm:$0xff]
  %v525 = vld [vmem:[%s3 + $0x90] sm:$0xff]
  %v526 = vld [vmem:[%s3 + $0x98] sm:$0xff]
  %v527 = vld [vmem:[%s3 + $0xa0] sm:$0xff]
  %v528 = vld [vmem:[%s3 + $0xa8] sm:$0xff]
  %v529 = vld [vmem:[%s3 + $0xb0] sm:$0xff]
  %v530 = vld [vmem:[%s3 + $0xb8] sm:$0xff]
  %v531 = vld [vmem:[%s3 + $0xc0] sm:$0xff]
  %v532 = vld [vmem:[%s3 + $0xc8] sm:$0xff]
  %v533 = vld [vmem:[%s3 + $0xd0] sm:$0xff]
  %v534 = vld [vmem:[%s3 + $0xd8] sm:$0xff]
  %v535 = vld [vmem:[%s3 + $0xe0] sm:$0xff]
  %v536 = vld [vmem:[%s3 + $0xe8] sm:$0xff]
  %v537 = vld [vmem:[%s3 + $0xf0] sm:$0xff]
  %v538 = vld [vmem:[%s3 + $0xf8] sm:$0xff]
  %v539 = vld [vmem:[%s3 + $0x100] sm:$0xff]
  %v540 = vld [vmem:[%s3 + $0x108] sm:$0xff]
  %v541 = vld [vmem:[%s3 + $0x110] sm:$0xff]
  %v542 = vld [vmem:[%s3 + $0x118] sm:$0xff]
  %v543 = vld [vmem:[%s3 + $0x120] sm:$0xff]
  %v544 = vld [vmem:[%s3 + $0x128] sm:$0xff]
  %v545 = vld [vmem:[%s3 + $0x130] sm:$0xff]
  %v546 = vld [vmem:[%s3 + $0x138] sm:$0xff]
  %v547 = vld [vmem:[%s3 + $0x140] sm:$0xff]
  %v548 = vld [vmem:[%s3 + $0x148] sm:$0xff]
  %v549 = vld [vmem:[%s3 + $0x150] sm:$0xff]
  %v550 = vld [vmem:[%s3 + $0x158] sm:$0xff]
  %v551 = vld [vmem:[%s3 + $0x160] sm:$0xff]
  %v552 = vld [vmem:[%s3 + $0x168] sm:$0xff]
  %v553 = vld [vmem:[%s3 + $0x170] sm:$0xff]
  %v554 = vld [vmem:[%s3 + $0x178] sm:$0xff]
  %v555 = vld [vmem:[%s3 + $0x180] sm:$0xff]
  %v556 = vld [vmem:[%s3 + $0x188] sm:$0xff]
  %v557 = vld [vmem:[%s3 + $0x190] sm:$0xff]
  %v558 = vld [vmem:[%s3 + $0x198] sm:$0xff]
  %v559 = vld [vmem:[%s3 + $0x1a0] sm:$0xff]
  %v560 = vld [vmem:[%s3 + $0x1a8] sm:$0xff]
  %v561 = vld [vmem:[%s3 + $0x1b0] sm:$0xff]
  %v562 = vld [vmem:[%s3 + $0x1b8] sm:$0xff]
  %v563 = vld [vmem:[%s3 + $0x1c0] sm:$0xff]
  %v564 = vld [vmem:[%s3 + $0x1c8] sm:$0xff]
  %v565 = vld [vmem:[%s3 + $0x1d0] sm:$0xff]
  %v566 = vld [vmem:[%s3 + $0x1d8] sm:$0xff]
  %v567 = vld [vmem:[%s3 + $0x1e0] sm:$0xff]
  %v568 = vld [vmem:[%s3 + $0x1e8] sm:$0xff]
  %v569 = vld [vmem:[%s3 + $0x1f0] sm:$0xff]
  %v570 = vld [vmem:[%s3 + $0x1f8] sm:$0xff]
  %v571 = vld [vmem:[%s4] sm:$0x1]
  %v573 = vlaneseq
  %v574 = vshrl.u32 %v573, 7
  %v575 = vsub.s32 0, %v574
  %v576 = vrot.slane %v571, %v575
  %578 = vmatprep.subr.mxu0 0.0
  %579 = vmatpush1.msra.mxu0 %v507
  %580 = vmatprep.subr.mxu0 0.0
  %581 = vmatpush1.msra.mxu0 %v508
  %582 = vmatprep.subr.mxu0 0.0
  %583 = vmatpush1.msra.mxu0 %v509
  %584 = vmatprep.subr.mxu0 0.0
  %585 = vmatpush1.msra.mxu0 %v510
  %586 = vmatprep.subr.mxu0 0.0
  %587 = vmatpush1.msra.mxu0 %v511
  %588 = vmatprep.subr.mxu0 0.0
  %589 = vmatpush1.msra.mxu0 %v512
  %590 = vmatprep.subr.mxu0 0.0
  %591 = vmatpush1.msra.mxu0 %v513
  %592 = vmatprep.subr.mxu0 0.0
  %593 = vmatpush1.msra.mxu0 %v514
  %594 = vmatprep.subr.mxu0 0.0
  %595 = vmatpush1.msra.mxu0 %v515
  %596 = vmatprep.subr.mxu0 0.0
  %597 = vmatpush1.msra.mxu0 %v516
  %598 = vmatprep.subr.mxu0 0.0
  %599 = vmatpush1.msra.mxu0 %v517
  %600 = vmatprep.subr.mxu0 0.0
  %601 = vmatpush1.msra.mxu0 %v518
  %602 = vmatprep.subr.mxu0 0.0
  %603 = vmatpush1.msra.mxu0 %v519
  %604 = vmatprep.subr.mxu0 0.0
  %605 = vmatpush1.msra.mxu0 %v520
  %606 = vmatprep.subr.mxu0 0.0
  %607 = vmatpush1.msra.mxu0 %v521
  %608 = vmatprep.subr.mxu0 0.0
  %609 = vmatpush1.msra.mxu0 %v522
  %610 = vmatprep.subr.mxu0 0.0
  %611 = vmatpush1.msra.mxu0 %v523
  %612 = vmatprep.subr.mxu0 0.0
  %613 = vmatpush1.msra.mxu0 %v524
  %614 = vmatprep.subr.mxu0 0.0
  %615 = vmatpush1.msra.mxu0 %v525
  %616 = vmatprep.subr.mxu0 0.0
  %617 = vmatpush1.msra.mxu0 %v526
  %618 = vmatprep.subr.mxu0 0.0
  %619 = vmatpush1.msra.mxu0 %v527
  %620 = vmatprep.subr.mxu0 0.0
  %621 = vmatpush1.msra.mxu0 %v528
  %622 = vmatprep.subr.mxu0 0.0
  %623 = vmatpush1.msra.mxu0 %v529
  %624 = vmatprep.subr.mxu0 0.0
  %625 = vmatpush1.msra.mxu0 %v530
  %626 = vmatprep.subr.mxu0 0.0
  %627 = vmatpush1.msra.mxu0 %v531
  %628 = vmatprep.subr.mxu0 0.0
  %629 = vmatpush1.msra.mxu0 %v532
  %630 = vmatprep.subr.mxu0 0.0
  %631 = vmatpush1.msra.mxu0 %v533
  %632 = vmatprep.subr.mxu0 0.0
  %633 = vmatpush1.msra.mxu0 %v534
  %634 = vmatprep.subr.mxu0 0.0
  %635 = vmatpush1.msra.mxu0 %v535
  %636 = vmatprep.subr.mxu0 0.0
  %637 = vmatpush1.msra.mxu0 %v536
  %638 = vmatprep.subr.mxu0 0.0
  %639 = vmatpush1.msra.mxu0 %v537
  %640 = vmatprep.subr.mxu0 0.0
  %641 = vmatpush1.msra.mxu0 %v538
  %642 = vmatprep.mubr.f32.mxu0 %v504
  %643 = vmatmul.mubr.f32.gmra.mrb[0].mxu0 %v503
  %v644 = vpop.f32.mrb[0].mxu0
  %v645 = vadd.f32 %v576, %v644
  %v646 = vpop.f32.mrb[0].mxu0
  %647 = vdwg.mxu0
  %648 = vmatprep.subr.mxu0 0.0
  %649 = vmatpush1.msra.mxu0 %v539
  %650 = vmatprep.subr.mxu0 0.0
  %651 = vmatpush1.msra.mxu0 %v540
  %652 = vmatprep.subr.mxu0 0.0
  %653 = vmatpush1.msra.mxu0 %v541
  %654 = vmatprep.subr.mxu0 0.0
  %655 = vmatpush1.msra.mxu0 %v542
  %656 = vmatprep.subr.mxu0 0.0
  %657 = vmatpush1.msra.mxu0 %v543
  %658 = vmatprep.subr.mxu0 0.0
  %659 = vmatpush1.msra.mxu0 %v544
  %660 = vmatprep.subr.mxu0 0.0
  %661 = vmatpush1.msra.mxu0 %v545
  %662 = vmatprep.subr.mxu0 0.0
  %663 = vmatpush1.msra.mxu0 %v546
  %664 = vmatprep.subr.mxu0 0.0
  %665 = vmatpush1.msra.mxu0 %v547
  %666 = vmatprep.subr.mxu0 0.0
  %667 = vmatpush1.msra.mxu0 %v548
  %668 = vmatprep.subr.mxu0 0.0
  %669 = vmatpush1.msra.mxu0 %v549
  %670 = vmatprep.subr.mxu0 0.0
  %671 = vmatpush1.msra.mxu0 %v550
  %672 = vmatprep.subr.mxu0 0.0
  %673 = vmatpush1.msra.mxu0 %v551
  %674 = vmatprep.subr.mxu0 0.0
  %675 = vmatpush1.msra.mxu0 %v552
  %676 = vmatprep.subr.mxu0 0.0
  %677 = vmatpush1.msra.mxu0 %v553
  %678 = vmatprep.subr.mxu0 0.0
  %679 = vmatpush1.msra.mxu0 %v554
  %680 = vmatprep.subr.mxu0 0.0
  %681 = vmatpush1.msra.mxu0 %v555
  %682 = vmatprep.subr.mxu0 0.0
  %683 = vmatpush1.msra.mxu0 %v556
  %684 = vmatprep.subr.mxu0 0.0
  %685 = vmatpush1.msra.mxu0 %v557
  %686 = vmatprep.subr.mxu0 0.0
  %687 = vmatpush1.msra.mxu0 %v558
  %688 = vmatprep.subr.mxu0 0.0
  %689 = vmatpush1.msra.mxu0 %v559
  %690 = vmatprep.subr.mxu0 0.0
  %691 = vmatpush1.msra.mxu0 %v560
  %692 = vmatprep.subr.mxu0 0.0
  %693 = vmatpush1.msra.mxu0 %v561
  %694 = vmatprep.subr.mxu0 0.0
  %695 = vmatpush1.msra.mxu0 %v562
  %696 = vmatprep.subr.mxu0 0.0
  %697 = vmatpush1.msra.mxu0 %v563
  %698 = vmatprep.subr.mxu0 0.0
  %699 = vmatpush1.msra.mxu0 %v564
  %700 = vmatprep.subr.mxu0 0.0
  %701 = vmatpush1.msra.mxu0 %v565
  %702 = vmatprep.subr.mxu0 0.0
  %703 = vmatpush1.msra.mxu0 %v566
  %704 = vmatprep.subr.mxu0 0.0
  %705 = vmatpush1.msra.mxu0 %v567
  %706 = vmatprep.subr.mxu0 0.0
  %707 = vmatpush1.msra.mxu0 %v568
  %708 = vmatprep.subr.mxu0 0.0
  %709 = vmatpush1.msra.mxu0 %v569
  %710 = vmatprep.subr.mxu0 0.0
  %711 = vmatpush1.msra.mxu0 %v570
  %712 = vmatprep.mubr.f32.mxu0 %v506
  %713 = vmatmul.mubr.f32.gmra.mrb[0].mxu0 %v505
  %v714 = vpop.f32.mrb[0].mxu0
  %v715 = vadd.f32 %v645, %v714
  %v716 = vpop.f32.mrb[0].mxu0
  %717 = vdwg.mxu0
  %v718 = vmax.f32 %v715, 0.0
  %v719 = vld [vmem:[%s5] sm:$0xff]
  %v720 = vld [vmem:[%s5 + $0x8] sm:$0xff]
  %v721 = vld [vmem:[%s5 + $0x10] sm:$0xff]
  %v722 = vld [vmem:[%s5 + $0x18] sm:$0xff]
  %v723 = vld [vmem:[%s5 + $0x20] sm:$0xff]
  %v724 = vld [vmem:[%s5 + $0x28] sm:$0xff]
  %v725 = vld [vmem:[%s5 + $0x30] sm:$0xff]
  %v726 = vld [vmem:[%s5 + $0x38] sm:$0xff]
  %v727 = vld [vmem:[%s6] sm:$0x1]
  %v729 = vlaneseq
  %v730 = vshrl.u32 %v729, 7
  %v731 = vsub.s32 0, %v730
  %v732 = vrot.slane %v727, %v731
  %vm734 = vcmask 523264
  %v736 = vsel %vm734, %v718, 0
  %738 = vmatprep.subr.mxu0 0.0
  %739 = vmatpush1.msra.mxu0 %v719
  %740 = vmatprep.subr.mxu0 0.0
  %741 = vmatpush1.msra.mxu0 %v720
  %742 = vmatprep.subr.mxu0 0.0
  %743 = vmatpush1.msra.mxu0 %v721
  %744 = vmatprep.subr.mxu0 0.0
  %745 = vmatpush1.msra.mxu0 %v722
  %746 = vmatprep.subr.mxu0 0.0
  %747 = vmatpush1.msra.mxu0 %v723
  %748 = vmatprep.subr.mxu0 0.0
  %749 = vmatpush1.msra.mxu0 %v724
  %750 = vmatprep.subr.mxu0 0.0
  %751 = vmatpush1.msra.mxu0 %v725
  %752 = vmatprep.subr.mxu0 0.0
  %753 = vmatpush1.msra.mxu0 %v726
  %754 = vmatprep.subr.mxu0 0.0
  %755 = vmatpush1.msra.mxu0 0.0
  %756 = vmatprep.subr.mxu0 0.0
  %757 = vmatpush1.msra.mxu0 0.0
  %758 = vmatprep.subr.mxu0 0.0
  %759 = vmatpush1.msra.mxu0 0.0
  %760 = vmatprep.subr.mxu0 0.0
  %761 = vmatpush1.msra.mxu0 0.0
  %762 = vmatprep.subr.mxu0 0.0
  %763 = vmatpush1.msra.mxu0 0.0
  %764 = vmatprep.subr.mxu0 0.0
  %765 = vmatpush1.msra.mxu0 0.0
  %766 = vmatprep.subr.mxu0 0.0
  %767 = vmatpush1.msra.mxu0 0.0
  %768 = vmatprep.subr.mxu0 0.0
  %769 = vmatpush1.msra.mxu0 0.0
  %770 = vmatprep.subr.mxu0 0.0
  %771 = vmatpush1.msra.mxu0 0.0
  %772 = vmatprep.subr.mxu0 0.0
  %773 = vmatpush1.msra.mxu0 0.0
  %774 = vmatprep.subr.mxu0 0.0
  %775 = vmatpush1.msra.mxu0 0.0
  %776 = vmatprep.subr.mxu0 0.0
  %777 = vmatpush1.msra.mxu0 0.0
  %778 = vmatprep.subr.mxu0 0.0
  %779 = vmatpush1.msra.mxu0 0.0
  %780 = vmatprep.subr.mxu0 0.0
  %781 = vmatpush1.msra.mxu0 0.0
  %782 = vmatprep.subr.mxu0 0.0
  %783 = vmatpush1.msra.mxu0 0.0
  %784 = vmatprep.subr.mxu0 0.0
  %785 = vmatpush1.msra.mxu0 0.0
  %786 = vmatprep.subr.mxu0 0.0
  %787 = vmatpush1.msra.mxu0 0.0
  %788 = vmatprep.subr.mxu0 0.0
  %789 = vmatpush1.msra.mxu0 0.0
  %790 = vmatprep.subr.mxu0 0.0
  %791 = vmatpush1.msra.mxu0 0.0
  %792 = vmatprep.subr.mxu0 0.0
  %793 = vmatpush1.msra.mxu0 0.0
  %794 = vmatprep.subr.mxu0 0.0
  %795 = vmatpush1.msra.mxu0 0.0
  %796 = vmatprep.subr.mxu0 0.0
  %797 = vmatpush1.msra.mxu0 0.0
  %798 = vmatprep.subr.mxu0 0.0
  %799 = vmatpush1.msra.mxu0 0.0
  %800 = vmatprep.subr.mxu0 0.0
  %801 = vmatpush1.msra.mxu0 0.0
  %802 = vmatprep.mubr.f32.mxu0 0.0
  %803 = vmatmul.mubr.f32.gmra.mrb[0].mxu0 %v736
  %v804 = vpop.f32.mrb[0].mxu0
  %v805 = vadd.f32 %v732, %v804
  %v806 = vpop.f32.mrb[0].mxu0
  %807 = vdwg.mxu0
  %v808 = vmax.f32 %v805, 0.0
  %v809 = vld [vmem:[%s7] sm:$0x1]
  %v810 = vlaneseq
  %v811 = vshrl.u32 %v810, 7
  %v812 = vsub.s32 0, %v811
  %v813 = vrot.slane %v809, %v812
  %v814 = vmul.f32 %v808, %v813
  %v815 = vadd.f32 %v814, 0.0
  %s816 = scalar_lea.vmem %s1, 5
  %v817 = vld [vmem:[%s816] ss:$8 sm:$0xf]
  %v818 = vld [vmem:[%s816] ss:$8 sm:$0x10]
  %v819 = vor.u32 %v817, %v818
  %v821 = vlaneseq
  %v822 = vshrl.u32 %v821, 7
  %v823 = vsub.s32 0, %v822
  %v824 = vrot.slane %v819, %v823
  %v825 = vlaneseq
  %v826 = vshrl.u32 %v825, 7
  %v827 = vsub.s32 1, %v826
  %v828 = vrot.slane %v819, %v827
  %v829 = vlaneseq
  %v830 = vshrl.u32 %v829, 7
  %v831 = vsub.s32 2, %v830
  %v832 = vrot.slane %v819, %v831
  %v833 = vlaneseq
  %v834 = vshrl.u32 %v833, 7
  %v835 = vsub.s32 3, %v834
  %v836 = vrot.slane %v819, %v835
  %v837 = vlaneseq
  %v838 = vshrl.u32 %v837, 7
  %v839 = vsub.s32 4, %v838
  %v840 = vrot.slane %v819, %v839
  %v846 = vmul.f32 %v33, %v824
  %v847 = vmul.f32 %v34, %v828
  %v848 = vmul.f32 %v35, %v832
  %v849 = vmul.f32 %v36, %v836
  %v850 = vmul.f32 %v37, %v840
  %s851 = scalar_lea.vmem %s1, 6
  %v852 = vld [vmem:[%s851] ss:$8 sm:$0xf]
  %v853 = vld [vmem:[%s851] ss:$8 sm:$0x10]
  %v854 = vor.u32 %v852, %v853
  %v856 = vlaneseq
  %v857 = vshrl.u32 %v856, 7
  %v858 = vsub.s32 0, %v857
  %v859 = vrot.slane %v854, %v858
  %v860 = vlaneseq
  %v861 = vshrl.u32 %v860, 7
  %v862 = vsub.s32 1, %v861
  %v863 = vrot.slane %v854, %v862
  %v864 = vlaneseq
  %v865 = vshrl.u32 %v864, 7
  %v866 = vsub.s32 2, %v865
  %v867 = vrot.slane %v854, %v866
  %v868 = vlaneseq
  %v869 = vshrl.u32 %v868, 7
  %v870 = vsub.s32 3, %v869
  %v871 = vrot.slane %v854, %v870
  %v872 = vlaneseq
  %v873 = vshrl.u32 %v872, 7
  %v874 = vsub.s32 4, %v873
  %v875 = vrot.slane %v854, %v874
  %876 = vrot.lane.b32.xlu0 %v859, 1
  %v877 = vpop.permute.xlu0 %876
  %878 = vrot.lane.b32.xlu0 %v863, 1
  %v879 = vpop.permute.xlu0 %878
  %880 = vrot.lane.b32.xlu0 %v867, 1
  %v881 = vpop.permute.xlu0 %880
  %882 = vrot.lane.b32.xlu0 %v871, 1
  %v883 = vpop.permute.xlu0 %882
  %884 = vrot.lane.b32.xlu0 %v875, 1
  %v885 = vpop.permute.xlu0 %884
  %v886 = vsel %vm107, %v877, %v879
  %v887 = vsel %vm107, %v879, %v881
  %v888 = vsel %vm107, %v881, %v883
  %v889 = vsel %vm107, %v883, %v885
  %v895 = vmul.f32 %v33, %v877
  %v896 = vmul.f32 %v34, %v886
  %v897 = vmul.f32 %v35, %v887
  %v898 = vmul.f32 %v36, %v888
  %v899 = vmul.f32 %v37, %v889
  %905 = vrot.lane.b32.xlu0 %v895, 127
  %v906 = vpop.permute.xlu0 %905
  %907 = vrot.lane.b32.xlu0 %v896, 127
  %v908 = vpop.permute.xlu0 %907
  %909 = vrot.lane.b32.xlu0 %v897, 127
  %v910 = vpop.permute.xlu0 %909
  %911 = vrot.lane.b32.xlu0 %v898, 127
  %v912 = vpop.permute.xlu0 %911
  %913 = vrot.lane.b32.xlu0 %v899, 127
  %v914 = vpop.permute.xlu0 %913
  %v915 = vsel %vm137, %v906, %v908
  %v916 = vsel %vm137, %v908, %v910
  %v917 = vsel %vm137, %v910, %v912
  %v918 = vsel %vm137, %v912, %v914
  %v924 = vadd.f32 %v846, %v915
  %v925 = vadd.f32 %v847, %v916
  %v926 = vadd.f32 %v848, %v917
  %v927 = vadd.f32 %v849, %v918
  %v928 = vadd.f32 %v850, %v914
  %s929 = scalar_lea.vmem %s1, 7
  %v930 = vld [vmem:[%s929] ss:$8 sm:$0xf]
  %v931 = vld [vmem:[%s929] ss:$8 sm:$0x10]
  %v932 = vor.u32 %v930, %v931
  %v934 = vlaneseq
  %v935 = vshrl.u32 %v934, 7
  %v936 = vsub.s32 0, %v935
  %v937 = vrot.slane %v932, %v936
  %v938 = vlaneseq
  %v939 = vshrl.u32 %v938, 7
  %v940 = vsub.s32 1, %v939
  %v941 = vrot.slane %v932, %v940
  %v942 = vlaneseq
  %v943 = vshrl.u32 %v942, 7
  %v944 = vsub.s32 2, %v943
  %v945 = vrot.slane %v932, %v944
  %v946 = vlaneseq
  %v947 = vshrl.u32 %v946, 7
  %v948 = vsub.s32 3, %v947
  %v949 = vrot.slane %v932, %v948
  %v950 = vlaneseq
  %v951 = vshrl.u32 %v950, 7
  %v952 = vsub.s32 4, %v951
  %v953 = vrot.slane %v932, %v952
  %954 = vrot.lane.b32.xlu0 %v937, 2
  %v955 = vpop.permute.xlu0 %954
  %956 = vrot.lane.b32.xlu0 %v941, 2
  %v957 = vpop.permute.xlu0 %956
  %958 = vrot.lane.b32.xlu0 %v945, 2
  %v959 = vpop.permute.xlu0 %958
  %960 = vrot.lane.b32.xlu0 %v949, 2
  %v961 = vpop.permute.xlu0 %960
  %962 = vrot.lane.b32.xlu0 %v953, 2
  %v963 = vpop.permute.xlu0 %962
  %v964 = vsel %vm187, %v955, %v957
  %v965 = vsel %vm187, %v957, %v959
  %v966 = vsel %vm187, %v959, %v961
  %v967 = vsel %vm187, %v961, %v963
  %v973 = vmul.f32 %v33, %v955
  %v974 = vmul.f32 %v34, %v964
  %v975 = vmul.f32 %v35, %v965
  %v976 = vmul.f32 %v36, %v966
  %v977 = vmul.f32 %v37, %v967
  %983 = vrot.lane.b32.xlu0 %v973, 126
  %v984 = vpop.permute.xlu0 %983
  %985 = vrot.lane.b32.xlu0 %v974, 126
  %v986 = vpop.permute.xlu0 %985
  %987 = vrot.lane.b32.xlu0 %v975, 126
  %v988 = vpop.permute.xlu0 %987
  %989 = vrot.lane.b32.xlu0 %v976, 126
  %v990 = vpop.permute.xlu0 %989
  %991 = vrot.lane.b32.xlu0 %v977, 126
  %v992 = vpop.permute.xlu0 %991
  %v993 = vsel %vm217, %v984, %v986
  %v994 = vsel %vm217, %v986, %v988
  %v995 = vsel %vm217, %v988, %v990
  %v996 = vsel %vm217, %v990, %v992
  %v1002 = vadd.f32 %v924, %v993
  %v1003 = vadd.f32 %v925, %v994
  %v1004 = vadd.f32 %v926, %v995
  %v1005 = vadd.f32 %v927, %v996
  %v1006 = vadd.f32 %v928, %v992
  %s1007 = scalar_lea.vmem %s1, 40
  %v1008 = vld [vmem:[%s1007] ss:$8 sm:$0xf]
  %v1009 = vld [vmem:[%s1007] ss:$8 sm:$0x10]
  %v1010 = vor.u32 %v1008, %v1009
  %v1012 = vlaneseq
  %v1013 = vshrl.u32 %v1012, 7
  %v1014 = vsub.s32 0, %v1013
  %v1015 = vrot.slane %v1010, %v1014
  %v1016 = vlaneseq
  %v1017 = vshrl.u32 %v1016, 7
  %v1018 = vsub.s32 1, %v1017
  %v1019 = vrot.slane %v1010, %v1018
  %v1020 = vlaneseq
  %v1021 = vshrl.u32 %v1020, 7
  %v1022 = vsub.s32 2, %v1021
  %v1023 = vrot.slane %v1010, %v1022
  %v1024 = vlaneseq
  %v1025 = vshrl.u32 %v1024, 7
  %v1026 = vsub.s32 3, %v1025
  %v1027 = vrot.slane %v1010, %v1026
  %v1028 = vlaneseq
  %v1029 = vshrl.u32 %v1028, 7
  %v1030 = vsub.s32 4, %v1029
  %v1031 = vrot.slane %v1010, %v1030
  %1032 = vrot.lane.b32.xlu0 %v1015, 3
  %v1033 = vpop.permute.xlu0 %1032
  %1034 = vrot.lane.b32.xlu0 %v1019, 3
  %v1035 = vpop.permute.xlu0 %1034
  %1036 = vrot.lane.b32.xlu0 %v1023, 3
  %v1037 = vpop.permute.xlu0 %1036
  %1038 = vrot.lane.b32.xlu0 %v1027, 3
  %v1039 = vpop.permute.xlu0 %1038
  %1040 = vrot.lane.b32.xlu0 %v1031, 3
  %v1041 = vpop.permute.xlu0 %1040
  %v1042 = vsel %vm267, %v1033, %v1035
  %v1043 = vsel %vm267, %v1035, %v1037
  %v1044 = vsel %vm267, %v1037, %v1039
  %v1045 = vsel %vm267, %v1039, %v1041
  %v1051 = vmul.f32 %v33, %v1033
  %v1052 = vmul.f32 %v34, %v1042
  %v1053 = vmul.f32 %v35, %v1043
  %v1054 = vmul.f32 %v36, %v1044
  %v1055 = vmul.f32 %v37, %v1045
  %1061 = vrot.lane.b32.xlu0 %v1051, 125
  %v1062 = vpop.permute.xlu0 %1061
  %1063 = vrot.lane.b32.xlu0 %v1052, 125
  %v1064 = vpop.permute.xlu0 %1063
  %1065 = vrot.lane.b32.xlu0 %v1053, 125
  %v1066 = vpop.permute.xlu0 %1065
  %1067 = vrot.lane.b32.xlu0 %v1054, 125
  %v1068 = vpop.permute.xlu0 %1067
  %1069 = vrot.lane.b32.xlu0 %v1055, 125
  %v1070 = vpop.permute.xlu0 %1069
  %v1071 = vsel %vm297, %v1062, %v1064
  %v1072 = vsel %vm297, %v1064, %v1066
  %v1073 = vsel %vm297, %v1066, %v1068
  %v1074 = vsel %vm297, %v1068, %v1070
  %v1080 = vadd.f32 %v1002, %v1071
  %v1081 = vadd.f32 %v1003, %v1072
  %v1082 = vadd.f32 %v1004, %v1073
  %v1083 = vadd.f32 %v1005, %v1074
  %v1084 = vadd.f32 %v1006, %v1070
  %s1085 = scalar_lea.vmem %s1, 41
  %v1086 = vld [vmem:[%s1085] ss:$8 sm:$0xf]
  %v1087 = vld [vmem:[%s1085] ss:$8 sm:$0x10]
  %v1088 = vor.u32 %v1086, %v1087
  %v1090 = vlaneseq
  %v1091 = vshrl.u32 %v1090, 7
  %v1092 = vsub.s32 0, %v1091
  %v1093 = vrot.slane %v1088, %v1092
  %v1094 = vlaneseq
  %v1095 = vshrl.u32 %v1094, 7
  %v1096 = vsub.s32 1, %v1095
  %v1097 = vrot.slane %v1088, %v1096
  %v1098 = vlaneseq
  %v1099 = vshrl.u32 %v1098, 7
  %v1100 = vsub.s32 2, %v1099
  %v1101 = vrot.slane %v1088, %v1100
  %v1102 = vlaneseq
  %v1103 = vshrl.u32 %v1102, 7
  %v1104 = vsub.s32 3, %v1103
  %v1105 = vrot.slane %v1088, %v1104
  %v1106 = vlaneseq
  %v1107 = vshrl.u32 %v1106, 7
  %v1108 = vsub.s32 4, %v1107
  %v1109 = vrot.slane %v1088, %v1108
  %1110 = vrot.lane.b32.xlu0 %v1093, 4
  %v1111 = vpop.permute.xlu0 %1110
  %1112 = vrot.lane.b32.xlu0 %v1097, 4
  %v1113 = vpop.permute.xlu0 %1112
  %1114 = vrot.lane.b32.xlu0 %v1101, 4
  %v1115 = vpop.permute.xlu0 %1114
  %1116 = vrot.lane.b32.xlu0 %v1105, 4
  %v1117 = vpop.permute.xlu0 %1116
  %1118 = vrot.lane.b32.xlu0 %v1109, 4
  %v1119 = vpop.permute.xlu0 %1118
  %v1120 = vsel %vm347, %v1111, %v1113
  %v1121 = vsel %vm347, %v1113, %v1115
  %v1122 = vsel %vm347, %v1115, %v1117
  %v1123 = vsel %vm347, %v1117, %v1119
  %v1129 = vmul.f32 %v33, %v1111
  %v1130 = vmul.f32 %v34, %v1120
  %v1131 = vmul.f32 %v35, %v1121
  %v1132 = vmul.f32 %v36, %v1122
  %v1133 = vmul.f32 %v37, %v1123
  %1139 = vrot.lane.b32.xlu0 %v1129, 124
  %v1140 = vpop.permute.xlu0 %1139
  %1141 = vrot.lane.b32.xlu0 %v1130, 124
  %v1142 = vpop.permute.xlu0 %1141
  %1143 = vrot.lane.b32.xlu0 %v1131, 124
  %v1144 = vpop.permute.xlu0 %1143
  %1145 = vrot.lane.b32.xlu0 %v1132, 124
  %v1146 = vpop.permute.xlu0 %1145
  %1147 = vrot.lane.b32.xlu0 %v1133, 124
  %v1148 = vpop.permute.xlu0 %1147
  %v1149 = vsel %vm377, %v1140, %v1142
  %v1150 = vsel %vm377, %v1142, %v1144
  %v1151 = vsel %vm377, %v1144, %v1146
  %v1152 = vsel %vm377, %v1146, %v1148
  %v1158 = vadd.f32 %v1080, %v1149
  %v1159 = vadd.f32 %v1081, %v1150
  %v1160 = vadd.f32 %v1082, %v1151
  %v1161 = vadd.f32 %v1083, %v1152
  %v1162 = vadd.f32 %v1084, %v1148
  %s1163 = scalar_lea.vmem %s2, 1
  %v1164 = vld [vmem:[%s1163] ss:$4 sm:$0x1f]
  %v1166 = vlaneseq
  %v1167 = vshrl.u32 %v1166, 7
  %v1168 = vsub.s32 0, %v1167
  %v1169 = vrot.slane %v1164, %v1168
  %v1170 = vlaneseq
  %v1171 = vshrl.u32 %v1170, 7
  %v1172 = vsub.s32 1, %v1171
  %v1173 = vrot.slane %v1164, %v1172
  %v1174 = vlaneseq
  %v1175 = vshrl.u32 %v1174, 7
  %v1176 = vsub.s32 2, %v1175
  %v1177 = vrot.slane %v1164, %v1176
  %v1178 = vlaneseq
  %v1179 = vshrl.u32 %v1178, 7
  %v1180 = vsub.s32 3, %v1179
  %v1181 = vrot.slane %v1164, %v1180
  %v1182 = vlaneseq
  %v1183 = vshrl.u32 %v1182, 7
  %v1184 = vsub.s32 4, %v1183
  %v1185 = vrot.slane %v1164, %v1184
  %v1191 = vadd.f32 %v1158, %v1169
  %v1192 = vadd.f32 %v1159, %v1173
  %v1193 = vadd.f32 %v1160, %v1177
  %v1194 = vadd.f32 %v1161, %v1181
  %v1195 = vadd.f32 %v1162, %v1185
  %v1196 = vmax.f32 %v1191, 0.0
  %v1197 = vmax.f32 %v1192, 0.0
  %v1198 = vmax.f32 %v1193, 0.0
  %v1199 = vmax.f32 %v1194, 0.0
  %v1200 = vmax.f32 %v1195, 0.0
  %1206 = vrot.lane.b32.xlu0 %v1196, 127
  %v1207 = vpop.permute.xlu0 %1206
  %1208 = vrot.lane.b32.xlu0 %v1197, 127
  %v1209 = vpop.permute.xlu0 %1208
  %1210 = vrot.lane.b32.xlu0 %v1198, 127
  %v1211 = vpop.permute.xlu0 %1210
  %1212 = vrot.lane.b32.xlu0 %v1199, 127
  %v1213 = vpop.permute.xlu0 %1212
  %1214 = vrot.lane.b32.xlu0 %v1200, 127
  %v1215 = vpop.permute.xlu0 %1214
  %v1216 = vsel %vm137, %v1207, %v1209
  %v1217 = vsel %vm137, %v1209, %v1211
  %v1218 = vsel %vm137, %v1211, %v1213
  %v1219 = vsel %vm137, %v1213, %v1215
  %v1225 = vmax.f32 %v1196, %v1216
  %v1226 = vmax.f32 %v1197, %v1217
  %v1227 = vmax.f32 %v1198, %v1218
  %v1228 = vmax.f32 %v1199, %v1219
  %v1229 = vmax.f32 %v1200, %v1215
  %1235 = vrot.lane.b32.xlu0 %v1225, 126
  %v1236 = vpop.permute.xlu0 %1235
  %1237 = vrot.lane.b32.xlu0 %v1226, 126
  %v1238 = vpop.permute.xlu0 %1237
  %1239 = vrot.lane.b32.xlu0 %v1227, 126
  %v1240 = vpop.permute.xlu0 %1239
  %1241 = vrot.lane.b32.xlu0 %v1228, 126
  %v1242 = vpop.permute.xlu0 %1241
  %1243 = vrot.lane.b32.xlu0 %v1229, 126
  %v1244 = vpop.permute.xlu0 %1243
  %v1245 = vsel %vm217, %v1236, %v1238
  %v1246 = vsel %vm217, %v1238, %v1240
  %v1247 = vsel %vm217, %v1240, %v1242
  %v1248 = vsel %vm217, %v1242, %v1244
  %v1253 = vmax.f32 %v1225, %v1245
  %v1254 = vmax.f32 %v1226, %v1246
  %v1255 = vmax.f32 %v1227, %v1247
  %v1256 = vmax.f32 %v1228, %v1248
  %1257 = vrot.lane.b32.xlu0 %v1196, 124
  %v1258 = vpop.permute.xlu0 %1257
  %1259 = vrot.lane.b32.xlu0 %v1197, 124
  %v1260 = vpop.permute.xlu0 %1259
  %1261 = vrot.lane.b32.xlu0 %v1198, 124
  %v1262 = vpop.permute.xlu0 %1261
  %1263 = vrot.lane.b32.xlu0 %v1199, 124
  %v1264 = vpop.permute.xlu0 %1263
  %1265 = vrot.lane.b32.xlu0 %v1200, 124
  %v1266 = vpop.permute.xlu0 %1265
  %v1267 = vsel %vm377, %v1258, %v1260
  %v1268 = vsel %vm377, %v1260, %v1262
  %v1269 = vsel %vm377, %v1262, %v1264
  %v1270 = vsel %vm377, %v1264, %v1266
  %v1275 = vmax.f32 %v1253, %v1267
  %v1276 = vmax.f32 %v1254, %v1268
  %v1277 = vmax.f32 %v1255, %v1269
  %v1278 = vmax.f32 %v1256, %v1270
  %1279 = vmatprep.subr.mxu0 0.0
  %1280 = vmatpush1.msra.mxu0 %v507
  %1281 = vmatprep.subr.mxu0 0.0
  %1282 = vmatpush1.msra.mxu0 %v508
  %1283 = vmatprep.subr.mxu0 0.0
  %1284 = vmatpush1.msra.mxu0 %v509
  %1285 = vmatprep.subr.mxu0 0.0
  %1286 = vmatpush1.msra.mxu0 %v510
  %1287 = vmatprep.subr.mxu0 0.0
  %1288 = vmatpush1.msra.mxu0 %v511
  %1289 = vmatprep.subr.mxu0 0.0
  %1290 = vmatpush1.msra.mxu0 %v512
  %1291 = vmatprep.subr.mxu0 0.0
  %1292 = vmatpush1.msra.mxu0 %v513
  %1293 = vmatprep.subr.mxu0 0.0
  %1294 = vmatpush1.msra.mxu0 %v514
  %1295 = vmatprep.subr.mxu0 0.0
  %1296 = vmatpush1.msra.mxu0 %v515
  %1297 = vmatprep.subr.mxu0 0.0
  %1298 = vmatpush1.msra.mxu0 %v516
  %1299 = vmatprep.subr.mxu0 0.0
  %1300 = vmatpush1.msra.mxu0 %v517
  %1301 = vmatprep.subr.mxu0 0.0
  %1302 = vmatpush1.msra.mxu0 %v518
  %1303 = vmatprep.subr.mxu0 0.0
  %1304 = vmatpush1.msra.mxu0 %v519
  %1305 = vmatprep.subr.mxu0 0.0
  %1306 = vmatpush1.msra.mxu0 %v520
  %1307 = vmatprep.subr.mxu0 0.0
  %1308 = vmatpush1.msra.mxu0 %v521
  %1309 = vmatprep.subr.mxu0 0.0
  %1310 = vmatpush1.msra.mxu0 %v522
  %1311 = vmatprep.subr.mxu0 0.0
  %1312 = vmatpush1.msra.mxu0 %v523
  %1313 = vmatprep.subr.mxu0 0.0
  %1314 = vmatpush1.msra.mxu0 %v524
  %1315 = vmatprep.subr.mxu0 0.0
  %1316 = vmatpush1.msra.mxu0 %v525
  %1317 = vmatprep.subr.mxu0 0.0
  %1318 = vmatpush1.msra.mxu0 %v526
  %1319 = vmatprep.subr.mxu0 0.0
  %1320 = vmatpush1.msra.mxu0 %v527
  %1321 = vmatprep.subr.mxu0 0.0
  %1322 = vmatpush1.msra.mxu0 %v528
  %1323 = vmatprep.subr.mxu0 0.0
  %1324 = vmatpush1.msra.mxu0 %v529
  %1325 = vmatprep.subr.mxu0 0.0
  %1326 = vmatpush1.msra.mxu0 %v530
  %1327 = vmatprep.subr.mxu0 0.0
  %1328 = vmatpush1.msra.mxu0 %v531
  %1329 = vmatprep.subr.mxu0 0.0
  %1330 = vmatpush1.msra.mxu0 %v532
  %1331 = vmatprep.subr.mxu0 0.0
  %1332 = vmatpush1.msra.mxu0 %v533
  %1333 = vmatprep.subr.mxu0 0.0
  %1334 = vmatpush1.msra.mxu0 %v534
  %1335 = vmatprep.subr.mxu0 0.0
  %1336 = vmatpush1.msra.mxu0 %v535
  %1337 = vmatprep.subr.mxu0 0.0
  %1338 = vmatpush1.msra.mxu0 %v536
  %1339 = vmatprep.subr.mxu0 0.0
  %1340 = vmatpush1.msra.mxu0 %v537
  %1341 = vmatprep.subr.mxu0 0.0
  %1342 = vmatpush1.msra.mxu0 %v538
  %1343 = vmatprep.mubr.f32.mxu0 %v1276
  %1344 = vmatmul.mubr.f32.gmra.mrb[0].mxu0 %v1275
  %v1345 = vpop.f32.mrb[0].mxu0
  %v1346 = vadd.f32 %v576, %v1345
  %v1347 = vpop.f32.mrb[0].mxu0
  %1348 = vdwg.mxu0
  %1349 = vmatprep.subr.mxu0 0.0
  %1350 = vmatpush1.msra.mxu0 %v539
  %1351 = vmatprep.subr.mxu0 0.0
  %1352 = vmatpush1.msra.mxu0 %v540
  %1353 = vmatprep.subr.mxu0 0.0
  %1354 = vmatpush1.msra.mxu0 %v541
  %1355 = vmatprep.subr.mxu0 0.0
  %1356 = vmatpush1.msra.mxu0 %v542
  %1357 = vmatprep.subr.mxu0 0.0
  %1358 = vmatpush1.msra.mxu0 %v543
  %1359 = vmatprep.subr.mxu0 0.0
  %1360 = vmatpush1.msra.mxu0 %v544
  %1361 = vmatprep.subr.mxu0 0.0
  %1362 = vmatpush1.msra.mxu0 %v545
  %1363 = vmatprep.subr.mxu0 0.0
  %1364 = vmatpush1.msra.mxu0 %v546
  %1365 = vmatprep.subr.mxu0 0.0
  %1366 = vmatpush1.msra.mxu0 %v547
  %1367 = vmatprep.subr.mxu0 0.0
  %1368 = vmatpush1.msra.mxu0 %v548
  %1369 = vmatprep.subr.mxu0 0.0
  %1370 = vmatpush1.msra.mxu0 %v549
  %1371 = vmatprep.subr.mxu0 0.0
  %1372 = vmatpush1.msra.mxu0 %v550
  %1373 = vmatprep.subr.mxu0 0.0
  %1374 = vmatpush1.msra.mxu0 %v551
  %1375 = vmatprep.subr.mxu0 0.0
  %1376 = vmatpush1.msra.mxu0 %v552
  %1377 = vmatprep.subr.mxu0 0.0
  %1378 = vmatpush1.msra.mxu0 %v553
  %1379 = vmatprep.subr.mxu0 0.0
  %1380 = vmatpush1.msra.mxu0 %v554
  %1381 = vmatprep.subr.mxu0 0.0
  %1382 = vmatpush1.msra.mxu0 %v555
  %1383 = vmatprep.subr.mxu0 0.0
  %1384 = vmatpush1.msra.mxu0 %v556
  %1385 = vmatprep.subr.mxu0 0.0
  %1386 = vmatpush1.msra.mxu0 %v557
  %1387 = vmatprep.subr.mxu0 0.0
  %1388 = vmatpush1.msra.mxu0 %v558
  %1389 = vmatprep.subr.mxu0 0.0
  %1390 = vmatpush1.msra.mxu0 %v559
  %1391 = vmatprep.subr.mxu0 0.0
  %1392 = vmatpush1.msra.mxu0 %v560
  %1393 = vmatprep.subr.mxu0 0.0
  %1394 = vmatpush1.msra.mxu0 %v561
  %1395 = vmatprep.subr.mxu0 0.0
  %1396 = vmatpush1.msra.mxu0 %v562
  %1397 = vmatprep.subr.mxu0 0.0
  %1398 = vmatpush1.msra.mxu0 %v563
  %1399 = vmatprep.subr.mxu0 0.0
  %1400 = vmatpush1.msra.mxu0 %v564
  %1401 = vmatprep.subr.mxu0 0.0
  %1402 = vmatpush1.msra.mxu0 %v565
  %1403 = vmatprep.subr.mxu0 0.0
  %1404 = vmatpush1.msra.mxu0 %v566
  %1405 = vmatprep.subr.mxu0 0.0
  %1406 = vmatpush1.msra.mxu0 %v567
  %1407 = vmatprep.subr.mxu0 0.0
  %1408 = vmatpush1.msra.mxu0 %v568
  %1409 = vmatprep.subr.mxu0 0.0
  %1410 = vmatpush1.msra.mxu0 %v569
  %1411 = vmatprep.subr.mxu0 0.0
  %1412 = vmatpush1.msra.mxu0 %v570
  %1413 = vmatprep.mubr.f32.mxu0 %v1278
  %1414 = vmatmul.mubr.f32.gmra.mrb[0].mxu0 %v1277
  %v1415 = vpop.f32.mrb[0].mxu0
  %v1416 = vadd.f32 %v1346, %v1415
  %v1417 = vpop.f32.mrb[0].mxu0
  %1418 = vdwg.mxu0
  %v1419 = vmax.f32 %v1416, 0.0
  %v1421 = vsel %vm734, %v1419, 0
  %1423 = vmatprep.subr.mxu0 0.0
  %1424 = vmatpush1.msra.mxu0 %v719
  %1425 = vmatprep.subr.mxu0 0.0
  %1426 = vmatpush1.msra.mxu0 %v720
  %1427 = vmatprep.subr.mxu0 0.0
  %1428 = vmatpush1.msra.mxu0 %v721
  %1429 = vmatprep.subr.mxu0 0.0
  %1430 = vmatpush1.msra.mxu0 %v722
  %1431 = vmatprep.subr.mxu0 0.0
  %1432 = vmatpush1.msra.mxu0 %v723
  %1433 = vmatprep.subr.mxu0 0.0
  %1434 = vmatpush1.msra.mxu0 %v724
  %1435 = vmatprep.subr.mxu0 0.0
  %1436 = vmatpush1.msra.mxu0 %v725
  %1437 = vmatprep.subr.mxu0 0.0
  %1438 = vmatpush1.msra.mxu0 %v726
  %1439 = vmatprep.subr.mxu0 0.0
  %1440 = vmatpush1.msra.mxu0 0.0
  %1441 = vmatprep.subr.mxu0 0.0
  %1442 = vmatpush1.msra.mxu0 0.0
  %1443 = vmatprep.subr.mxu0 0.0
  %1444 = vmatpush1.msra.mxu0 0.0
  %1445 = vmatprep.subr.mxu0 0.0
  %1446 = vmatpush1.msra.mxu0 0.0
  %1447 = vmatprep.subr.mxu0 0.0
  %1448 = vmatpush1.msra.mxu0 0.0
  %1449 = vmatprep.subr.mxu0 0.0
  %1450 = vmatpush1.msra.mxu0 0.0
  %1451 = vmatprep.subr.mxu0 0.0
  %1452 = vmatpush1.msra.mxu0 0.0
  %1453 = vmatprep.subr.mxu0 0.0
  %1454 = vmatpush1.msra.mxu0 0.0
  %1455 = vmatprep.subr.mxu0 0.0
  %1456 = vmatpush1.msra.mxu0 0.0
  %1457 = vmatprep.subr.mxu0 0.0
  %1458 = vmatpush1.msra.mxu0 0.0
  %1459 = vmatprep.subr.mxu0 0.0
  %1460 = vmatpush1.msra.mxu0 0.0
  %1461 = vmatprep.subr.mxu0 0.0
  %1462 = vmatpush1.msra.mxu0 0.0
  %1463 = vmatprep.subr.mxu0 0.0
  %1464 = vmatpush1.msra.mxu0 0.0
  %1465 = vmatprep.subr.mxu0 0.0
  %1466 = vmatpush1.msra.mxu0 0.0
  %1467 = vmatprep.subr.mxu0 0.0
  %1468 = vmatpush1.msra.mxu0 0.0
  %1469 = vmatprep.subr.mxu0 0.0
  %1470 = vmatpush1.msra.mxu0 0.0
  %1471 = vmatprep.subr.mxu0 0.0
  %1472 = vmatpush1.msra.mxu0 0.0
  %1473 = vmatprep.subr.mxu0 0.0
  %1474 = vmatpush1.msra.mxu0 0.0
  %1475 = vmatprep.subr.mxu0 0.0
  %1476 = vmatpush1.msra.mxu0 0.0
  %1477 = vmatprep.subr.mxu0 0.0
  %1478 = vmatpush1.msra.mxu0 0.0
  %1479 = vmatprep.subr.mxu0 0.0
  %1480 = vmatpush1.msra.mxu0 0.0
  %1481 = vmatprep.subr.mxu0 0.0
  %1482 = vmatpush1.msra.mxu0 0.0
  %1483 = vmatprep.subr.mxu0 0.0
  %1484 = vmatpush1.msra.mxu0 0.0
  %1485 = vmatprep.subr.mxu0 0.0
  %1486 = vmatpush1.msra.mxu0 0.0
  %1487 = vmatprep.mubr.f32.mxu0 0.0
  %1488 = vmatmul.mubr.f32.gmra.mrb[0].mxu0 %v1421
  %v1489 = vpop.f32.mrb[0].mxu0
  %v1490 = vadd.f32 %v732, %v1489
  %v1491 = vpop.f32.mrb[0].mxu0
  %1492 = vdwg.mxu0
  %v1493 = vmax.f32 %v1490, 0.0
  %v1494 = vld [vmem:[%s7 + $0x1] sm:$0x1]
  %v1495 = vlaneseq
  %v1496 = vshrl.u32 %v1495, 7
  %v1497 = vsub.s32 0, %v1496
  %v1498 = vrot.slane %v1494, %v1497
  %v1499 = vmul.f32 %v1493, %v1498
  %v1500 = vadd.f32 %v815, %v1499
  %s1501 = scalar_lea.vmem %s1, 42
  %v1502 = vld [vmem:[%s1501] ss:$8 sm:$0xf]
  %v1503 = vld [vmem:[%s1501] ss:$8 sm:$0x10]
  %v1504 = vor.u32 %v1502, %v1503
  %v1506 = vlaneseq
  %v1507 = vshrl.u32 %v1506, 7
  %v1508 = vsub.s32 0, %v1507
  %v1509 = vrot.slane %v1504, %v1508
  %v1510 = vlaneseq
  %v1511 = vshrl.u32 %v1510, 7
  %v1512 = vsub.s32 1, %v1511
  %v1513 = vrot.slane %v1504, %v1512
  %v1514 = vlaneseq
  %v1515 = vshrl.u32 %v1514, 7
  %v1516 = vsub.s32 2, %v1515
  %v1517 = vrot.slane %v1504, %v1516
  %v1518 = vlaneseq
  %v1519 = vshrl.u32 %v1518, 7
  %v1520 = vsub.s32 3, %v1519
  %v1521 = vrot.slane %v1504, %v1520
  %v1522 = vlaneseq
  %v1523 = vshrl.u32 %v1522, 7
  %v1524 = vsub.s32 4, %v1523
  %v1525 = vrot.slane %v1504, %v1524
  %v1531 = vmul.f32 %v33, %v1509
  %v1532 = vmul.f32 %v34, %v1513
  %v1533 = vmul.f32 %v35, %v1517
  %v1534 = vmul.f32 %v36, %v1521
  %v1535 = vmul.f32 %v37, %v1525
  %s1536 = scalar_lea.vmem %s1, 43
  %v1537 = vld [vmem:[%s1536] ss:$8 sm:$0xf]
  %v1538 = vld [vmem:[%s1536] ss:$8 sm:$0x10]
  %v1539 = vor.u32 %v1537, %v1538
  %v1541 = vlaneseq
  %v1542 = vshrl.u32 %v1541, 7
  %v1543 = vsub.s32 0, %v1542
  %v1544 = vrot.slane %v1539, %v1543
  %v1545 = vlaneseq
  %v1546 = vshrl.u32 %v1545, 7
  %v1547 = vsub.s32 1, %v1546
  %v1548 = vrot.slane %v1539, %v1547
  %v1549 = vlaneseq
  %v1550 = vshrl.u32 %v1549, 7
  %v1551 = vsub.s32 2, %v1550
  %v1552 = vrot.slane %v1539, %v1551
  %v1553 = vlaneseq
  %v1554 = vshrl.u32 %v1553, 7
  %v1555 = vsub.s32 3, %v1554
  %v1556 = vrot.slane %v1539, %v1555
  %v1557 = vlaneseq
  %v1558 = vshrl.u32 %v1557, 7
  %v1559 = vsub.s32 4, %v1558
  %v1560 = vrot.slane %v1539, %v1559
  %1561 = vrot.lane.b32.xlu0 %v1544, 1
  %v1562 = vpop.permute.xlu0 %1561
  %1563 = vrot.lane.b32.xlu0 %v1548, 1
  %v1564 = vpop.permute.xlu0 %1563
  %1565 = vrot.lane.b32.xlu0 %v1552, 1
  %v1566 = vpop.permute.xlu0 %1565
  %1567 = vrot.lane.b32.xlu0 %v1556, 1
  %v1568 = vpop.permute.xlu0 %1567
  %1569 = vrot.lane.b32.xlu0 %v1560, 1
  %v1570 = vpop.permute.xlu0 %1569
  %v1571 = vsel %vm107, %v1562, %v1564
  %v1572 = vsel %vm107, %v1564, %v1566
  %v1573 = vsel %vm107, %v1566, %v1568
  %v1574 = vsel %vm107, %v1568, %v1570
  %v1580 = vmul.f32 %v33, %v1562
  %v1581 = vmul.f32 %v34, %v1571
  %v1582 = vmul.f32 %v35, %v1572
  %v1583 = vmul.f32 %v36, %v1573
  %v1584 = vmul.f32 %v37, %v1574
  %1590 = vrot.lane.b32.xlu0 %v1580, 127
  %v1591 = vpop.permute.xlu0 %1590
  %1592 = vrot.lane.b32.xlu0 %v1581, 127
  %v1593 = vpop.permute.xlu0 %1592
  %1594 = vrot.lane.b32.xlu0 %v1582, 127
  %v1595 = vpop.permute.xlu0 %1594
  %1596 = vrot.lane.b32.xlu0 %v1583, 127
  %v1597 = vpop.permute.xlu0 %1596
  %1598 = vrot.lane.b32.xlu0 %v1584, 127
  %v1599 = vpop.permute.xlu0 %1598
  %v1600 = vsel %vm137, %v1591, %v1593
  %v1601 = vsel %vm137, %v1593, %v1595
  %v1602 = vsel %vm137, %v1595, %v1597
  %v1603 = vsel %vm137, %v1597, %v1599
  %v1609 = vadd.f32 %v1531, %v1600
  %v1610 = vadd.f32 %v1532, %v1601
  %v1611 = vadd.f32 %v1533, %v1602
  %v1612 = vadd.f32 %v1534, %v1603
  %v1613 = vadd.f32 %v1535, %v1599
  %s1614 = scalar_lea.vmem %s1, 44
  %v1615 = vld [vmem:[%s1614] ss:$8 sm:$0xf]
  %v1616 = vld [vmem:[%s1614] ss:$8 sm:$0x10]
  %v1617 = vor.u32 %v1615, %v1616
  %v1619 = vlaneseq
  %v1620 = vshrl.u32 %v1619, 7
  %v1621 = vsub.s32 0, %v1620
  %v1622 = vrot.slane %v1617, %v1621
  %v1623 = vlaneseq
  %v1624 = vshrl.u32 %v1623, 7
  %v1625 = vsub.s32 1, %v1624
  %v1626 = vrot.slane %v1617, %v1625
  %v1627 = vlaneseq
  %v1628 = vshrl.u32 %v1627, 7
  %v1629 = vsub.s32 2, %v1628
  %v1630 = vrot.slane %v1617, %v1629
  %v1631 = vlaneseq
  %v1632 = vshrl.u32 %v1631, 7
  %v1633 = vsub.s32 3, %v1632
  %v1634 = vrot.slane %v1617, %v1633
  %v1635 = vlaneseq
  %v1636 = vshrl.u32 %v1635, 7
  %v1637 = vsub.s32 4, %v1636
  %v1638 = vrot.slane %v1617, %v1637
  %1639 = vrot.lane.b32.xlu0 %v1622, 2
  %v1640 = vpop.permute.xlu0 %1639
  %1641 = vrot.lane.b32.xlu0 %v1626, 2
  %v1642 = vpop.permute.xlu0 %1641
  %1643 = vrot.lane.b32.xlu0 %v1630, 2
  %v1644 = vpop.permute.xlu0 %1643
  %1645 = vrot.lane.b32.xlu0 %v1634, 2
  %v1646 = vpop.permute.xlu0 %1645
  %1647 = vrot.lane.b32.xlu0 %v1638, 2
  %v1648 = vpop.permute.xlu0 %1647
  %v1649 = vsel %vm187, %v1640, %v1642
  %v1650 = vsel %vm187, %v1642, %v1644
  %v1651 = vsel %vm187, %v1644, %v1646
  %v1652 = vsel %vm187, %v1646, %v1648
  %v1658 = vmul.f32 %v33, %v1640
  %v1659 = vmul.f32 %v34, %v1649
  %v1660 = vmul.f32 %v35, %v1650
  %v1661 = vmul.f32 %v36, %v1651
  %v1662 = vmul.f32 %v37, %v1652
  %1668 = vrot.lane.b32.xlu0 %v1658, 126
  %v1669 = vpop.permute.xlu0 %1668
  %1670 = vrot.lane.b32.xlu0 %v1659, 126
  %v1671 = vpop.permute.xlu0 %1670
  %1672 = vrot.lane.b32.xlu0 %v1660, 126
  %v1673 = vpop.permute.xlu0 %1672
  %1674 = vrot.lane.b32.xlu0 %v1661, 126
  %v1675 = vpop.permute.xlu0 %1674
  %1676 = vrot.lane.b32.xlu0 %v1662, 126
  %v1677 = vpop.permute.xlu0 %1676
  %v1678 = vsel %vm217, %v1669, %v1671
  %v1679 = vsel %vm217, %v1671, %v1673
  %v1680 = vsel %vm217, %v1673, %v1675
  %v1681 = vsel %vm217, %v1675, %v1677
  %v1687 = vadd.f32 %v1609, %v1678
  %v1688 = vadd.f32 %v1610, %v1679
  %v1689 = vadd.f32 %v1611, %v1680
  %v1690 = vadd.f32 %v1612, %v1681
  %v1691 = vadd.f32 %v1613, %v1677
  %s1692 = scalar_lea.vmem %s1, 45
  %v1693 = vld [vmem:[%s1692] ss:$8 sm:$0xf]
  %v1694 = vld [vmem:[%s1692] ss:$8 sm:$0x10]
  %v1695 = vor.u32 %v1693, %v1694
  %v1697 = vlaneseq
  %v1698 = vshrl.u32 %v1697, 7
  %v1699 = vsub.s32 0, %v1698
  %v1700 = vrot.slane %v1695, %v1699
  %v1701 = vlaneseq
  %v1702 = vshrl.u32 %v1701, 7
  %v1703 = vsub.s32 1, %v1702
  %v1704 = vrot.slane %v1695, %v1703
  %v1705 = vlaneseq
  %v1706 = vshrl.u32 %v1705, 7
  %v1707 = vsub.s32 2, %v1706
  %v1708 = vrot.slane %v1695, %v1707
  %v1709 = vlaneseq
  %v1710 = vshrl.u32 %v1709, 7
  %v1711 = vsub.s32 3, %v1710
  %v1712 = vrot.slane %v1695, %v1711
  %v1713 = vlaneseq
  %v1714 = vshrl.u32 %v1713, 7
  %v1715 = vsub.s32 4, %v1714
  %v1716 = vrot.slane %v1695, %v1715
  %1717 = vrot.lane.b32.xlu0 %v1700, 3
  %v1718 = vpop.permute.xlu0 %1717
  %1719 = vrot.lane.b32.xlu0 %v1704, 3
  %v1720 = vpop.permute.xlu0 %1719
  %1721 = vrot.lane.b32.xlu0 %v1708, 3
  %v1722 = vpop.permute.xlu0 %1721
  %1723 = vrot.lane.b32.xlu0 %v1712, 3
  %v1724 = vpop.permute.xlu0 %1723
  %1725 = vrot.lane.b32.xlu0 %v1716, 3
  %v1726 = vpop.permute.xlu0 %1725
  %v1727 = vsel %vm267, %v1718, %v1720
  %v1728 = vsel %vm267, %v1720, %v1722
  %v1729 = vsel %vm267, %v1722, %v1724
  %v1730 = vsel %vm267, %v1724, %v1726
  %v1736 = vmul.f32 %v33, %v1718
  %v1737 = vmul.f32 %v34, %v1727
  %v1738 = vmul.f32 %v35, %v1728
  %v1739 = vmul.f32 %v36, %v1729
  %v1740 = vmul.f32 %v37, %v1730
  %1746 = vrot.lane.b32.xlu0 %v1736, 125
  %v1747 = vpop.permute.xlu0 %1746
  %1748 = vrot.lane.b32.xlu0 %v1737, 125
  %v1749 = vpop.permute.xlu0 %1748
  %1750 = vrot.lane.b32.xlu0 %v1738, 125
  %v1751 = vpop.permute.xlu0 %1750
  %1752 = vrot.lane.b32.xlu0 %v1739, 125
  %v1753 = vpop.permute.xlu0 %1752
  %1754 = vrot.lane.b32.xlu0 %v1740, 125
  %v1755 = vpop.permute.xlu0 %1754
  %v1756 = vsel %vm297, %v1747, %v1749
  %v1757 = vsel %vm297, %v1749, %v1751
  %v1758 = vsel %vm297, %v1751, %v1753
  %v1759 = vsel %vm297, %v1753, %v1755
  %v1765 = vadd.f32 %v1687, %v1756
  %v1766 = vadd.f32 %v1688, %v1757
  %v1767 = vadd.f32 %v1689, %v1758
  %v1768 = vadd.f32 %v1690, %v1759
  %v1769 = vadd.f32 %v1691, %v1755
  %s1770 = scalar_lea.vmem %s1, 46
  %v1771 = vld [vmem:[%s1770] ss:$8 sm:$0xf]
  %v1772 = vld [vmem:[%s1770] ss:$8 sm:$0x10]
  %v1773 = vor.u32 %v1771, %v1772
  %v1775 = vlaneseq
  %v1776 = vshrl.u32 %v1775, 7
  %v1777 = vsub.s32 0, %v1776
  %v1778 = vrot.slane %v1773, %v1777
  %v1779 = vlaneseq
  %v1780 = vshrl.u32 %v1779, 7
  %v1781 = vsub.s32 1, %v1780
  %v1782 = vrot.slane %v1773, %v1781
  %v1783 = vlaneseq
  %v1784 = vshrl.u32 %v1783, 7
  %v1785 = vsub.s32 2, %v1784
  %v1786 = vrot.slane %v1773, %v1785
  %v1787 = vlaneseq
  %v1788 = vshrl.u32 %v1787, 7
  %v1789 = vsub.s32 3, %v1788
  %v1790 = vrot.slane %v1773, %v1789
  %v1791 = vlaneseq
  %v1792 = vshrl.u32 %v1791, 7
  %v1793 = vsub.s32 4, %v1792
  %v1794 = vrot.slane %v1773, %v1793
  %1795 = vrot.lane.b32.xlu0 %v1778, 4
  %v1796 = vpop.permute.xlu0 %1795
  %1797 = vrot.lane.b32.xlu0 %v1782, 4
  %v1798 = vpop.permute.xlu0 %1797
  %1799 = vrot.lane.b32.xlu0 %v1786, 4
  %v1800 = vpop.permute.xlu0 %1799
  %1801 = vrot.lane.b32.xlu0 %v1790, 4
  %v1802 = vpop.permute.xlu0 %1801
  %1803 = vrot.lane.b32.xlu0 %v1794, 4
  %v1804 = vpop.permute.xlu0 %1803
  %v1805 = vsel %vm347, %v1796, %v1798
  %v1806 = vsel %vm347, %v1798, %v1800
  %v1807 = vsel %vm347, %v1800, %v1802
  %v1808 = vsel %vm347, %v1802, %v1804
  %v1814 = vmul.f32 %v33, %v1796
  %v1815 = vmul.f32 %v34, %v1805
  %v1816 = vmul.f32 %v35, %v1806
  %v1817 = vmul.f32 %v36, %v1807
  %v1818 = vmul.f32 %v37, %v1808
  %1824 = vrot.lane.b32.xlu0 %v1814, 124
  %v1825 = vpop.permute.xlu0 %1824
  %1826 = vrot.lane.b32.xlu0 %v1815, 124
  %v1827 = vpop.permute.xlu0 %1826
  %1828 = vrot.lane.b32.xlu0 %v1816, 124
  %v1829 = vpop.permute.xlu0 %1828
  %1830 = vrot.lane.b32.xlu0 %v1817, 124
  %v1831 = vpop.permute.xlu0 %1830
  %1832 = vrot.lane.b32.xlu0 %v1818, 124
  %v1833 = vpop.permute.xlu0 %1832
  %v1834 = vsel %vm377, %v1825, %v1827
  %v1835 = vsel %vm377, %v1827, %v1829
  %v1836 = vsel %vm377, %v1829, %v1831
  %v1837 = vsel %vm377, %v1831, %v1833
  %v1843 = vadd.f32 %v1765, %v1834
  %v1844 = vadd.f32 %v1766, %v1835
  %v1845 = vadd.f32 %v1767, %v1836
  %v1846 = vadd.f32 %v1768, %v1837
  %v1847 = vadd.f32 %v1769, %v1833
  %s1848 = scalar_lea.vmem %s2, 2
  %v1849 = vld [vmem:[%s1848] ss:$4 sm:$0x1f]
  %v1851 = vlaneseq
  %v1852 = vshrl.u32 %v1851, 7
  %v1853 = vsub.s32 0, %v1852
  %v1854 = vrot.slane %v1849, %v1853
  %v1855 = vlaneseq
  %v1856 = vshrl.u32 %v1855, 7
  %v1857 = vsub.s32 1, %v1856
  %v1858 = vrot.slane %v1849, %v1857
  %v1859 = vlaneseq
  %v1860 = vshrl.u32 %v1859, 7
  %v1861 = vsub.s32 2, %v1860
  %v1862 = vrot.slane %v1849, %v1861
  %v1863 = vlaneseq
  %v1864 = vshrl.u32 %v1863, 7
  %v1865 = vsub.s32 3, %v1864
  %v1866 = vrot.slane %v1849, %v1865
  %v1867 = vlaneseq
  %v1868 = vshrl.u32 %v1867, 7
  %v1869 = vsub.s32 4, %v1868
  %v1870 = vrot.slane %v1849, %v1869
  %v1876 = vadd.f32 %v1843, %v1854
  %v1877 = vadd.f32 %v1844, %v1858
  %v1878 = vadd.f32 %v1845, %v1862
  %v1879 = vadd.f32 %v1846, %v1866
  %v1880 = vadd.f32 %v1847, %v1870
  %v1881 = vmax.f32 %v1876, 0.0
  %v1882 = vmax.f32 %v1877, 0.0
  %v1883 = vmax.f32 %v1878, 0.0
  %v1884 = vmax.f32 %v1879, 0.0
  %v1885 = vmax.f32 %v1880, 0.0
  %1891 = vrot.lane.b32.xlu0 %v1881, 127
  %v1892 = vpop.permute.xlu0 %1891
  %1893 = vrot.lane.b32.xlu0 %v1882, 127
  %v1894 = vpop.permute.xlu0 %1893
  %1895 = vrot.lane.b32.xlu0 %v1883, 127
  %v1896 = vpop.permute.xlu0 %1895
  %1897 = vrot.lane.b32.xlu0 %v1884, 127
  %v1898 = vpop.permute.xlu0 %1897
  %1899 = vrot.lane.b32.xlu0 %v1885, 127
  %v1900 = vpop.permute.xlu0 %1899
  %v1901 = vsel %vm137, %v1892, %v1894
  %v1902 = vsel %vm137, %v1894, %v1896
  %v1903 = vsel %vm137, %v1896, %v1898
  %v1904 = vsel %vm137, %v1898, %v1900
  %v1910 = vmax.f32 %v1881, %v1901
  %v1911 = vmax.f32 %v1882, %v1902
  %v1912 = vmax.f32 %v1883, %v1903
  %v1913 = vmax.f32 %v1884, %v1904
  %v1914 = vmax.f32 %v1885, %v1900
  %1920 = vrot.lane.b32.xlu0 %v1910, 126
  %v1921 = vpop.permute.xlu0 %1920
  %1922 = vrot.lane.b32.xlu0 %v1911, 126
  %v1923 = vpop.permute.xlu0 %1922
  %1924 = vrot.lane.b32.xlu0 %v1912, 126
  %v1925 = vpop.permute.xlu0 %1924
  %1926 = vrot.lane.b32.xlu0 %v1913, 126
  %v1927 = vpop.permute.xlu0 %1926
  %1928 = vrot.lane.b32.xlu0 %v1914, 126
  %v1929 = vpop.permute.xlu0 %1928
  %v1930 = vsel %vm217, %v1921, %v1923
  %v1931 = vsel %vm217, %v1923, %v1925
  %v1932 = vsel %vm217, %v1925, %v1927
  %v1933 = vsel %vm217, %v1927, %v1929
  %v1938 = vmax.f32 %v1910, %v1930
  %v1939 = vmax.f32 %v1911, %v1931
  %v1940 = vmax.f32 %v1912, %v1932
  %v1941 = vmax.f32 %v1913, %v1933
  %1942 = vrot.lane.b32.xlu0 %v1881, 124
  %v1943 = vpop.permute.xlu0 %1942
  %1944 = vrot.lane.b32.xlu0 %v1882, 124
  %v1945 = vpop.permute.xlu0 %1944
  %1946 = vrot.lane.b32.xlu0 %v1883, 124
  %v1947 = vpop.permute.xlu0 %1946
  %1948 = vrot.lane.b32.xlu0 %v1884, 124
  %v1949 = vpop.permute.xlu0 %1948
  %1950 = vrot.lane.b32.xlu0 %v1885, 124
  %v1951 = vpop.permute.xlu0 %1950
  %v1952 = vsel %vm377, %v1943, %v1945
  %v1953 = vsel %vm377, %v1945, %v1947
  %v1954 = vsel %vm377, %v1947, %v1949
  %v1955 = vsel %vm377, %v1949, %v1951
  %v1960 = vmax.f32 %v1938, %v1952
  %v1961 = vmax.f32 %v1939, %v1953
  %v1962 = vmax.f32 %v1940, %v1954
  %v1963 = vmax.f32 %v1941, %v1955
  %1964 = vmatprep.subr.mxu0 0.0
  %1965 = vmatpush1.msra.mxu0 %v507
  %1966 = vmatprep.subr.mxu0 0.0
  %1967 = vmatpush1.msra.mxu0 %v508
  %1968 = vmatprep.subr.mxu0 0.0
  %1969 = vmatpush1.msra.mxu0 %v509
  %1970 = vmatprep.subr.mxu0 0.0
  %1971 = vmatpush1.msra.mxu0 %v510
  %1972 = vmatprep.subr.mxu0 0.0
  %1973 = vmatpush1.msra.mxu0 %v511
  %1974 = vmatprep.subr.mxu0 0.0
  %1975 = vmatpush1.msra.mxu0 %v512
  %1976 = vmatprep.subr.mxu0 0.0
  %1977 = vmatpush1.msra.mxu0 %v513
  %1978 = vmatprep.subr.mxu0 0.0
  %1979 = vmatpush1.msra.mxu0 %v514
  %1980 = vmatprep.subr.mxu0 0.0
  %1981 = vmatpush1.msra.mxu0 %v515
  %1982 = vmatprep.subr.mxu0 0.0
  %1983 = vmatpush1.msra.mxu0 %v516
  %1984 = vmatprep.subr.mxu0 0.0
  %1985 = vmatpush1.msra.mxu0 %v517
  %1986 = vmatprep.subr.mxu0 0.0
  %1987 = vmatpush1.msra.mxu0 %v518
  %1988 = vmatprep.subr.mxu0 0.0
  %1989 = vmatpush1.msra.mxu0 %v519
  %1990 = vmatprep.subr.mxu0 0.0
  %1991 = vmatpush1.msra.mxu0 %v520
  %1992 = vmatprep.subr.mxu0 0.0
  %1993 = vmatpush1.msra.mxu0 %v521
  %1994 = vmatprep.subr.mxu0 0.0
  %1995 = vmatpush1.msra.mxu0 %v522
  %1996 = vmatprep.subr.mxu0 0.0
  %1997 = vmatpush1.msra.mxu0 %v523
  %1998 = vmatprep.subr.mxu0 0.0
  %1999 = vmatpush1.msra.mxu0 %v524
  %2000 = vmatprep.subr.mxu0 0.0
  %2001 = vmatpush1.msra.mxu0 %v525
  %2002 = vmatprep.subr.mxu0 0.0
  %2003 = vmatpush1.msra.mxu0 %v526
  %2004 = vmatprep.subr.mxu0 0.0
  %2005 = vmatpush1.msra.mxu0 %v527
  %2006 = vmatprep.subr.mxu0 0.0
  %2007 = vmatpush1.msra.mxu0 %v528
  %2008 = vmatprep.subr.mxu0 0.0
  %2009 = vmatpush1.msra.mxu0 %v529
  %2010 = vmatprep.subr.mxu0 0.0
  %2011 = vmatpush1.msra.mxu0 %v530
  %2012 = vmatprep.subr.mxu0 0.0
  %2013 = vmatpush1.msra.mxu0 %v531
  %2014 = vmatprep.subr.mxu0 0.0
  %2015 = vmatpush1.msra.mxu0 %v532
  %2016 = vmatprep.subr.mxu0 0.0
  %2017 = vmatpush1.msra.mxu0 %v533
  %2018 = vmatprep.subr.mxu0 0.0
  %2019 = vmatpush1.msra.mxu0 %v534
  %2020 = vmatprep.subr.mxu0 0.0
  %2021 = vmatpush1.msra.mxu0 %v535
  %2022 = vmatprep.subr.mxu0 0.0
  %2023 = vmatpush1.msra.mxu0 %v536
  %2024 = vmatprep.subr.mxu0 0.0
  %2025 = vmatpush1.msra.mxu0 %v537
  %2026 = vmatprep.subr.mxu0 0.0
  %2027 = vmatpush1.msra.mxu0 %v538
  %2028 = vmatprep.mubr.f32.mxu0 %v1961
  %2029 = vmatmul.mubr.f32.gmra.mrb[0].mxu0 %v1960
  %v2030 = vpop.f32.mrb[0].mxu0
  %v2031 = vadd.f32 %v576, %v2030
  %v2032 = vpop.f32.mrb[0].mxu0
  %2033 = vdwg.mxu0
  %2034 = vmatprep.subr.mxu0 0.0
  %2035 = vmatpush1.msra.mxu0 %v539
  %2036 = vmatprep.subr.mxu0 0.0
  %2037 = vmatpush1.msra.mxu0 %v540
  %2038 = vmatprep.subr.mxu0 0.0
  %2039 = vmatpush1.msra.mxu0 %v541
  %2040 = vmatprep.subr.mxu0 0.0
  %2041 = vmatpush1.msra.mxu0 %v542
  %2042 = vmatprep.subr.mxu0 0.0
  %2043 = vmatpush1.msra.mxu0 %v543
  %2044 = vmatprep.subr.mxu0 0.0
  %2045 = vmatpush1.msra.mxu0 %v544
  %2046 = vmatprep.subr.mxu0 0.0
  %2047 = vmatpush1.msra.mxu0 %v545
  %2048 = vmatprep.subr.mxu0 0.0
  %2049 = vmatpush1.msra.mxu0 %v546
  %2050 = vmatprep.subr.mxu0 0.0
  %2051 = vmatpush1.msra.mxu0 %v547
  %2052 = vmatprep.subr.mxu0 0.0
  %2053 = vmatpush1.msra.mxu0 %v548
  %2054 = vmatprep.subr.mxu0 0.0
  %2055 = vmatpush1.msra.mxu0 %v549
  %2056 = vmatprep.subr.mxu0 0.0
  %2057 = vmatpush1.msra.mxu0 %v550
  %2058 = vmatprep.subr.mxu0 0.0
  %2059 = vmatpush1.msra.mxu0 %v551
  %2060 = vmatprep.subr.mxu0 0.0
  %2061 = vmatpush1.msra.mxu0 %v552
  %2062 = vmatprep.subr.mxu0 0.0
  %2063 = vmatpush1.msra.mxu0 %v553
  %2064 = vmatprep.subr.mxu0 0.0
  %2065 = vmatpush1.msra.mxu0 %v554
  %2066 = vmatprep.subr.mxu0 0.0
  %2067 = vmatpush1.msra.mxu0 %v555
  %2068 = vmatprep.subr.mxu0 0.0
  %2069 = vmatpush1.msra.mxu0 %v556
  %2070 = vmatprep.subr.mxu0 0.0
  %2071 = vmatpush1.msra.mxu0 %v557
  %2072 = vmatprep.subr.mxu0 0.0
  %2073 = vmatpush1.msra.mxu0 %v558
  %2074 = vmatprep.subr.mxu0 0.0
  %2075 = vmatpush1.msra.mxu0 %v559
  %2076 = vmatprep.subr.mxu0 0.0
  %2077 = vmatpush1.msra.mxu0 %v560
  %2078 = vmatprep.subr.mxu0 0.0
  %2079 = vmatpush1.msra.mxu0 %v561
  %2080 = vmatprep.subr.mxu0 0.0
  %2081 = vmatpush1.msra.mxu0 %v562
  %2082 = vmatprep.subr.mxu0 0.0
  %2083 = vmatpush1.msra.mxu0 %v563
  %2084 = vmatprep.subr.mxu0 0.0
  %2085 = vmatpush1.msra.mxu0 %v564
  %2086 = vmatprep.subr.mxu0 0.0
  %2087 = vmatpush1.msra.mxu0 %v565
  %2088 = vmatprep.subr.mxu0 0.0
  %2089 = vmatpush1.msra.mxu0 %v566
  %2090 = vmatprep.subr.mxu0 0.0
  %2091 = vmatpush1.msra.mxu0 %v567
  %2092 = vmatprep.subr.mxu0 0.0
  %2093 = vmatpush1.msra.mxu0 %v568
  %2094 = vmatprep.subr.mxu0 0.0
  %2095 = vmatpush1.msra.mxu0 %v569
  %2096 = vmatprep.subr.mxu0 0.0
  %2097 = vmatpush1.msra.mxu0 %v570
  %2098 = vmatprep.mubr.f32.mxu0 %v1963
  %2099 = vmatmul.mubr.f32.gmra.mrb[0].mxu0 %v1962
  %v2100 = vpop.f32.mrb[0].mxu0
  %v2101 = vadd.f32 %v2031, %v2100
  %v2102 = vpop.f32.mrb[0].mxu0
  %2103 = vdwg.mxu0
  %v2104 = vmax.f32 %v2101, 0.0
  %v2106 = vsel %vm734, %v2104, 0
  %2108 = vmatprep.subr.mxu0 0.0
  %2109 = vmatpush1.msra.mxu0 %v719
  %2110 = vmatprep.subr.mxu0 0.0
  %2111 = vmatpush1.msra.mxu0 %v720
  %2112 = vmatprep.subr.mxu0 0.0
  %2113 = vmatpush1.msra.mxu0 %v721
  %2114 = vmatprep.subr.mxu0 0.0
  %2115 = vmatpush1.msra.mxu0 %v722
  %2116 = vmatprep.subr.mxu0 0.0
  %2117 = vmatpush1.msra.mxu0 %v723
  %2118 = vmatprep.subr.mxu0 0.0
  %2119 = vmatpush1.msra.mxu0 %v724
  %2120 = vmatprep.subr.mxu0 0.0
  %2121 = vmatpush1.msra.mxu0 %v725
  %2122 = vmatprep.subr.mxu0 0.0
  %2123 = vmatpush1.msra.mxu0 %v726
  %2124 = vmatprep.subr.mxu0 0.0
  %2125 = vmatpush1.msra.mxu0 0.0
  %2126 = vmatprep.subr.mxu0 0.0
  %2127 = vmatpush1.msra.mxu0 0.0
  %2128 = vmatprep.subr.mxu0 0.0
  %2129 = vmatpush1.msra.mxu0 0.0
  %2130 = vmatprep.subr.mxu0 0.0
  %2131 = vmatpush1.msra.mxu0 0.0
  %2132 = vmatprep.subr.mxu0 0.0
  %2133 = vmatpush1.msra.mxu0 0.0
  %2134 = vmatprep.subr.mxu0 0.0
  %2135 = vmatpush1.msra.mxu0 0.0
  %2136 = vmatprep.subr.mxu0 0.0
  %2137 = vmatpush1.msra.mxu0 0.0
  %2138 = vmatprep.subr.mxu0 0.0
  %2139 = vmatpush1.msra.mxu0 0.0
  %2140 = vmatprep.subr.mxu0 0.0
  %2141 = vmatpush1.msra.mxu0 0.0
  %2142 = vmatprep.subr.mxu0 0.0
  %2143 = vmatpush1.msra.mxu0 0.0
  %2144 = vmatprep.subr.mxu0 0.0
  %2145 = vmatpush1.msra.mxu0 0.0
  %2146 = vmatprep.subr.mxu0 0.0
  %2147 = vmatpush1.msra.mxu0 0.0
  %2148 = vmatprep.subr.mxu0 0.0
  %2149 = vmatpush1.msra.mxu0 0.0
  %2150 = vmatprep.subr.mxu0 0.0
  %2151 = vmatpush1.msra.mxu0 0.0
  %2152 = vmatprep.subr.mxu0 0.0
  %2153 = vmatpush1.msra.mxu0 0.0
  %2154 = vmatprep.subr.mxu0 0.0
  %2155 = vmatpush1.msra.mxu0 0.0
  %2156 = vmatprep.subr.mxu0 0.0
  %2157 = vmatpush1.msra.mxu0 0.0
  %2158 = vmatprep.subr.mxu0 0.0
  %2159 = vmatpush1.msra.mxu0 0.0
  %2160 = vmatprep.subr.mxu0 0.0
  %2161 = vmatpush1.msra.mxu0 0.0
  %2162 = vmatprep.subr.mxu0 0.0
  %2163 = vmatpush1.msra.mxu0 0.0
  %2164 = vmatprep.subr.mxu0 0.0
  %2165 = vmatpush1.msra.mxu0 0.0
  %2166 = vmatprep.subr.mxu0 0.0
  %2167 = vmatpush1.msra.mxu0 0.0
  %2168 = vmatprep.subr.mxu0 0.0
  %2169 = vmatpush1.msra.mxu0 0.0
  %2170 = vmatprep.subr.mxu0 0.0
  %2171 = vmatpush1.msra.mxu0 0.0
  %2172 = vmatprep.mubr.f32.mxu0 0.0
  %2173 = vmatmul.mubr.f32.gmra.mrb[0].mxu0 %v2106
  %v2174 = vpop.f32.mrb[0].mxu0
  %v2175 = vadd.f32 %v732, %v2174
  %v2176 = vpop.f32.mrb[0].mxu0
  %2177 = vdwg.mxu0
  %v2178 = vmax.f32 %v2175, 0.0
  %v2179 = vld [vmem:[%s7 + $0x2] sm:$0x1]
  %v2180 = vlaneseq
  %v2181 = vshrl.u32 %v2180, 7
  %v2182 = vsub.s32 0, %v2181
  %v2183 = vrot.slane %v2179, %v2182
  %v2184 = vmul.f32 %v2178, %v2183
  %v2185 = vadd.f32 %v1500, %v2184
  %s2186 = scalar_lea.vmem %s1, 47
  %v2187 = vld [vmem:[%s2186] ss:$8 sm:$0xf]
  %v2188 = vld [vmem:[%s2186] ss:$8 sm:$0x10]
  %v2189 = vor.u32 %v2187, %v2188
  %v2191 = vlaneseq
  %v2192 = vshrl.u32 %v2191, 7
  %v2193 = vsub.s32 0, %v2192
  %v2194 = vrot.slane %v2189, %v2193
  %v2195 = vlaneseq
  %v2196 = vshrl.u32 %v2195, 7
  %v2197 = vsub.s32 1, %v2196
  %v2198 = vrot.slane %v2189, %v2197
  %v2199 = vlaneseq
  %v2200 = vshrl.u32 %v2199, 7
  %v2201 = vsub.s32 2, %v2200
  %v2202 = vrot.slane %v2189, %v2201
  %v2203 = vlaneseq
  %v2204 = vshrl.u32 %v2203, 7
  %v2205 = vsub.s32 3, %v2204
  %v2206 = vrot.slane %v2189, %v2205
  %v2207 = vlaneseq
  %v2208 = vshrl.u32 %v2207, 7
  %v2209 = vsub.s32 4, %v2208
  %v2210 = vrot.slane %v2189, %v2209
  %v2216 = vmul.f32 %v33, %v2194
  %v2217 = vmul.f32 %v34, %v2198
  %v2218 = vmul.f32 %v35, %v2202
  %v2219 = vmul.f32 %v36, %v2206
  %v2220 = vmul.f32 %v37, %v2210
  %s2221 = scalar_lea.vmem %s1, 80
  %v2222 = vld [vmem:[%s2221] ss:$8 sm:$0xf]
  %v2223 = vld [vmem:[%s2221] ss:$8 sm:$0x10]
  %v2224 = vor.u32 %v2222, %v2223
  %v2226 = vlaneseq
  %v2227 = vshrl.u32 %v2226, 7
  %v2228 = vsub.s32 0, %v2227
  %v2229 = vrot.slane %v2224, %v2228
  %v2230 = vlaneseq
  %v2231 = vshrl.u32 %v2230, 7
  %v2232 = vsub.s32 1, %v2231
  %v2233 = vrot.slane %v2224, %v2232
  %v2234 = vlaneseq
  %v2235 = vshrl.u32 %v2234, 7
  %v2236 = vsub.s32 2, %v2235
  %v2237 = vrot.slane %v2224, %v2236
  %v2238 = vlaneseq
  %v2239 = vshrl.u32 %v2238, 7
  %v2240 = vsub.s32 3, %v2239
  %v2241 = vrot.slane %v2224, %v2240
  %v2242 = vlaneseq
  %v2243 = vshrl.u32 %v2242, 7
  %v2244 = vsub.s32 4, %v2243
  %v2245 = vrot.slane %v2224, %v2244
  %2246 = vrot.lane.b32.xlu0 %v2229, 1
  %v2247 = vpop.permute.xlu0 %2246
  %2248 = vrot.lane.b32.xlu0 %v2233, 1
  %v2249 = vpop.permute.xlu0 %2248
  %2250 = vrot.lane.b32.xlu0 %v2237, 1
  %v2251 = vpop.permute.xlu0 %2250
  %2252 = vrot.lane.b32.xlu0 %v2241, 1
  %v2253 = vpop.permute.xlu0 %2252
  %2254 = vrot.lane.b32.xlu0 %v2245, 1
  %v2255 = vpop.permute.xlu0 %2254
  %v2256 = vsel %vm107, %v2247, %v2249
  %v2257 = vsel %vm107, %v2249, %v2251
  %v2258 = vsel %vm107, %v2251, %v2253
  %v2259 = vsel %vm107, %v2253, %v2255
  %v2265 = vmul.f32 %v33, %v2247
  %v2266 = vmul.f32 %v34, %v2256
  %v2267 = vmul.f32 %v35, %v2257
  %v2268 = vmul.f32 %v36, %v2258
  %v2269 = vmul.f32 %v37, %v2259
  %2275 = vrot.lane.b32.xlu0 %v2265, 127
  %v2276 = vpop.permute.xlu0 %2275
  %2277 = vrot.lane.b32.xlu0 %v2266, 127
  %v2278 = vpop.permute.xlu0 %2277
  %2279 = vrot.lane.b32.xlu0 %v2267, 127
  %v2280 = vpop.permute.xlu0 %2279
  %2281 = vrot.lane.b32.xlu0 %v2268, 127
  %v2282 = vpop.permute.xlu0 %2281
  %2283 = vrot.lane.b32.xlu0 %v2269, 127
  %v2284 = vpop.permute.xlu0 %2283
  %v2285 = vsel %vm137, %v2276, %v2278
  %v2286 = vsel %vm137, %v2278, %v2280
  %v2287 = vsel %vm137, %v2280, %v2282
  %v2288 = vsel %vm137, %v2282, %v2284
  %v2294 = vadd.f32 %v2216, %v2285
  %v2295 = vadd.f32 %v2217, %v2286
  %v2296 = vadd.f32 %v2218, %v2287
  %v2297 = vadd.f32 %v2219, %v2288
  %v2298 = vadd.f32 %v2220, %v2284
  %s2299 = scalar_lea.vmem %s1, 81
  %v2300 = vld [vmem:[%s2299] ss:$8 sm:$0xf]
  %v2301 = vld [vmem:[%s2299] ss:$8 sm:$0x10]
  %v2302 = vor.u32 %v2300, %v2301
  %v2304 = vlaneseq
  %v2305 = vshrl.u32 %v2304, 7
  %v2306 = vsub.s32 0, %v2305
  %v2307 = vrot.slane %v2302, %v2306
  %v2308 = vlaneseq
  %v2309 = vshrl.u32 %v2308, 7
  %v2310 = vsub.s32 1, %v2309
  %v2311 = vrot.slane %v2302, %v2310
  %v2312 = vlaneseq
  %v2313 = vshrl.u32 %v2312, 7
  %v2314 = vsub.s32 2, %v2313
  %v2315 = vrot.slane %v2302, %v2314
  %v2316 = vlaneseq
  %v2317 = vshrl.u32 %v2316, 7
  %v2318 = vsub.s32 3, %v2317
  %v2319 = vrot.slane %v2302, %v2318
  %v2320 = vlaneseq
  %v2321 = vshrl.u32 %v2320, 7
  %v2322 = vsub.s32 4, %v2321
  %v2323 = vrot.slane %v2302, %v2322
  %2324 = vrot.lane.b32.xlu0 %v2307, 2
  %v2325 = vpop.permute.xlu0 %2324
  %2326 = vrot.lane.b32.xlu0 %v2311, 2
  %v2327 = vpop.permute.xlu0 %2326
  %2328 = vrot.lane.b32.xlu0 %v2315, 2
  %v2329 = vpop.permute.xlu0 %2328
  %2330 = vrot.lane.b32.xlu0 %v2319, 2
  %v2331 = vpop.permute.xlu0 %2330
  %2332 = vrot.lane.b32.xlu0 %v2323, 2
  %v2333 = vpop.permute.xlu0 %2332
  %v2334 = vsel %vm187, %v2325, %v2327
  %v2335 = vsel %vm187, %v2327, %v2329
  %v2336 = vsel %vm187, %v2329, %v2331
  %v2337 = vsel %vm187, %v2331, %v2333
  %v2343 = vmul.f32 %v33, %v2325
  %v2344 = vmul.f32 %v34, %v2334
  %v2345 = vmul.f32 %v35, %v2335
  %v2346 = vmul.f32 %v36, %v2336
  %v2347 = vmul.f32 %v37, %v2337
  %2353 = vrot.lane.b32.xlu0 %v2343, 126
  %v2354 = vpop.permute.xlu0 %2353
  %2355 = vrot.lane.b32.xlu0 %v2344, 126
  %v2356 = vpop.permute.xlu0 %2355
  %2357 = vrot.lane.b32.xlu0 %v2345, 126
  %v2358 = vpop.permute.xlu0 %2357
  %2359 = vrot.lane.b32.xlu0 %v2346, 126
  %v2360 = vpop.permute.xlu0 %2359
  %2361 = vrot.lane.b32.xlu0 %v2347, 126
  %v2362 = vpop.permute.xlu0 %2361
  %v2363 = vsel %vm217, %v2354, %v2356
  %v2364 = vsel %vm217, %v2356, %v2358
  %v2365 = vsel %vm217, %v2358, %v2360
  %v2366 = vsel %vm217, %v2360, %v2362
  %v2372 = vadd.f32 %v2294, %v2363
  %v2373 = vadd.f32 %v2295, %v2364
  %v2374 = vadd.f32 %v2296, %v2365
  %v2375 = vadd.f32 %v2297, %v2366
  %v2376 = vadd.f32 %v2298, %v2362
  %s2377 = scalar_lea.vmem %s1, 82
  %v2378 = vld [vmem:[%s2377] ss:$8 sm:$0xf]
  %v2379 = vld [vmem:[%s2377] ss:$8 sm:$0x10]
  %v2380 = vor.u32 %v2378, %v2379
  %v2382 = vlaneseq
  %v2383 = vshrl.u32 %v2382, 7
  %v2384 = vsub.s32 0, %v2383
  %v2385 = vrot.slane %v2380, %v2384
  %v2386 = vlaneseq
  %v2387 = vshrl.u32 %v2386, 7
  %v2388 = vsub.s32 1, %v2387
  %v2389 = vrot.slane %v2380, %v2388
  %v2390 = vlaneseq
  %v2391 = vshrl.u32 %v2390, 7
  %v2392 = vsub.s32 2, %v2391
  %v2393 = vrot.slane %v2380, %v2392
  %v2394 = vlaneseq
  %v2395 = vshrl.u32 %v2394, 7
  %v2396 = vsub.s32 3, %v2395
  %v2397 = vrot.slane %v2380, %v2396
  %v2398 = vlaneseq
  %v2399 = vshrl.u32 %v2398, 7
  %v2400 = vsub.s32 4, %v2399
  %v2401 = vrot.slane %v2380, %v2400
  %2402 = vrot.lane.b32.xlu0 %v2385, 3
  %v2403 = vpop.permute.xlu0 %2402
  %2404 = vrot.lane.b32.xlu0 %v2389, 3
  %v2405 = vpop.permute.xlu0 %2404
  %2406 = vrot.lane.b32.xlu0 %v2393, 3
  %v2407 = vpop.permute.xlu0 %2406
  %2408 = vrot.lane.b32.xlu0 %v2397, 3
  %v2409 = vpop.permute.xlu0 %2408
  %2410 = vrot.lane.b32.xlu0 %v2401, 3
  %v2411 = vpop.permute.xlu0 %2410
  %v2412 = vsel %vm267, %v2403, %v2405
  %v2413 = vsel %vm267, %v2405, %v2407
  %v2414 = vsel %vm267, %v2407, %v2409
  %v2415 = vsel %vm267, %v2409, %v2411
  %v2421 = vmul.f32 %v33, %v2403
  %v2422 = vmul.f32 %v34, %v2412
  %v2423 = vmul.f32 %v35, %v2413
  %v2424 = vmul.f32 %v36, %v2414
  %v2425 = vmul.f32 %v37, %v2415
  %2431 = vrot.lane.b32.xlu0 %v2421, 125
  %v2432 = vpop.permute.xlu0 %2431
  %2433 = vrot.lane.b32.xlu0 %v2422, 125
  %v2434 = vpop.permute.xlu0 %2433
  %2435 = vrot.lane.b32.xlu0 %v2423, 125
  %v2436 = vpop.permute.xlu0 %2435
  %2437 = vrot.lane.b32.xlu0 %v2424, 125
  %v2438 = vpop.permute.xlu0 %2437
  %2439 = vrot.lane.b32.xlu0 %v2425, 125
  %v2440 = vpop.permute.xlu0 %2439
  %v2441 = vsel %vm297, %v2432, %v2434
  %v2442 = vsel %vm297, %v2434, %v2436
  %v2443 = vsel %vm297, %v2436, %v2438
  %v2444 = vsel %vm297, %v2438, %v2440
  %v2450 = vadd.f32 %v2372, %v2441
  %v2451 = vadd.f32 %v2373, %v2442
  %v2452 = vadd.f32 %v2374, %v2443
  %v2453 = vadd.f32 %v2375, %v2444
  %v2454 = vadd.f32 %v2376, %v2440
  %s2455 = scalar_lea.vmem %s1, 83
  %v2456 = vld [vmem:[%s2455] ss:$8 sm:$0xf]
  %v2457 = vld [vmem:[%s2455] ss:$8 sm:$0x10]
  %v2458 = vor.u32 %v2456, %v2457
  %v2460 = vlaneseq
  %v2461 = vshrl.u32 %v2460, 7
  %v2462 = vsub.s32 0, %v2461
  %v2463 = vrot.slane %v2458, %v2462
  %v2464 = vlaneseq
  %v2465 = vshrl.u32 %v2464, 7
  %v2466 = vsub.s32 1, %v2465
  %v2467 = vrot.slane %v2458, %v2466
  %v2468 = vlaneseq
  %v2469 = vshrl.u32 %v2468, 7
  %v2470 = vsub.s32 2, %v2469
  %v2471 = vrot.slane %v2458, %v2470
  %v2472 = vlaneseq
  %v2473 = vshrl.u32 %v2472, 7
  %v2474 = vsub.s32 3, %v2473
  %v2475 = vrot.slane %v2458, %v2474
  %v2476 = vlaneseq
  %v2477 = vshrl.u32 %v2476, 7
  %v2478 = vsub.s32 4, %v2477
  %v2479 = vrot.slane %v2458, %v2478
  %2480 = vrot.lane.b32.xlu0 %v2463, 4
  %v2481 = vpop.permute.xlu0 %2480
  %2482 = vrot.lane.b32.xlu0 %v2467, 4
  %v2483 = vpop.permute.xlu0 %2482
  %2484 = vrot.lane.b32.xlu0 %v2471, 4
  %v2485 = vpop.permute.xlu0 %2484
  %2486 = vrot.lane.b32.xlu0 %v2475, 4
  %v2487 = vpop.permute.xlu0 %2486
  %2488 = vrot.lane.b32.xlu0 %v2479, 4
  %v2489 = vpop.permute.xlu0 %2488
  %v2490 = vsel %vm347, %v2481, %v2483
  %v2491 = vsel %vm347, %v2483, %v2485
  %v2492 = vsel %vm347, %v2485, %v2487
  %v2493 = vsel %vm347, %v2487, %v2489
  %v2499 = vmul.f32 %v33, %v2481
  %v2500 = vmul.f32 %v34, %v2490
  %v2501 = vmul.f32 %v35, %v2491
  %v2502 = vmul.f32 %v36, %v2492
  %v2503 = vmul.f32 %v37, %v2493
  %2509 = vrot.lane.b32.xlu0 %v2499, 124
  %v2510 = vpop.permute.xlu0 %2509
  %2511 = vrot.lane.b32.xlu0 %v2500, 124
  %v2512 = vpop.permute.xlu0 %2511
  %2513 = vrot.lane.b32.xlu0 %v2501, 124
  %v2514 = vpop.permute.xlu0 %2513
  %2515 = vrot.lane.b32.xlu0 %v2502, 124
  %v2516 = vpop.permute.xlu0 %2515
  %2517 = vrot.lane.b32.xlu0 %v2503, 124
  %v2518 = vpop.permute.xlu0 %2517
  %v2519 = vsel %vm377, %v2510, %v2512
  %v2520 = vsel %vm377, %v2512, %v2514
  %v2521 = vsel %vm377, %v2514, %v2516
  %v2522 = vsel %vm377, %v2516, %v2518
  %v2528 = vadd.f32 %v2450, %v2519
  %v2529 = vadd.f32 %v2451, %v2520
  %v2530 = vadd.f32 %v2452, %v2521
  %v2531 = vadd.f32 %v2453, %v2522
  %v2532 = vadd.f32 %v2454, %v2518
  %s2533 = scalar_lea.vmem %s2, 3
  %v2534 = vld [vmem:[%s2533] ss:$4 sm:$0x1f]
  %v2536 = vlaneseq
  %v2537 = vshrl.u32 %v2536, 7
  %v2538 = vsub.s32 0, %v2537
  %v2539 = vrot.slane %v2534, %v2538
  %v2540 = vlaneseq
  %v2541 = vshrl.u32 %v2540, 7
  %v2542 = vsub.s32 1, %v2541
  %v2543 = vrot.slane %v2534, %v2542
  %v2544 = vlaneseq
  %v2545 = vshrl.u32 %v2544, 7
  %v2546 = vsub.s32 2, %v2545
  %v2547 = vrot.slane %v2534, %v2546
  %v2548 = vlaneseq
  %v2549 = vshrl.u32 %v2548, 7
  %v2550 = vsub.s32 3, %v2549
  %v2551 = vrot.slane %v2534, %v2550
  %v2552 = vlaneseq
  %v2553 = vshrl.u32 %v2552, 7
  %v2554 = vsub.s32 4, %v2553
  %v2555 = vrot.slane %v2534, %v2554
  %v2561 = vadd.f32 %v2528, %v2539
  %v2562 = vadd.f32 %v2529, %v2543
  %v2563 = vadd.f32 %v2530, %v2547
  %v2564 = vadd.f32 %v2531, %v2551
  %v2565 = vadd.f32 %v2532, %v2555
  %v2566 = vmax.f32 %v2561, 0.0
  %v2567 = vmax.f32 %v2562, 0.0
  %v2568 = vmax.f32 %v2563, 0.0
  %v2569 = vmax.f32 %v2564, 0.0
  %v2570 = vmax.f32 %v2565, 0.0
  %2576 = vrot.lane.b32.xlu0 %v2566, 127
  %v2577 = vpop.permute.xlu0 %2576
  %2578 = vrot.lane.b32.xlu0 %v2567, 127
  %v2579 = vpop.permute.xlu0 %2578
  %2580 = vrot.lane.b32.xlu0 %v2568, 127
  %v2581 = vpop.permute.xlu0 %2580
  %2582 = vrot.lane.b32.xlu0 %v2569, 127
  %v2583 = vpop.permute.xlu0 %2582
  %2584 = vrot.lane.b32.xlu0 %v2570, 127
  %v2585 = vpop.permute.xlu0 %2584
  %v2586 = vsel %vm137, %v2577, %v2579
  %v2587 = vsel %vm137, %v2579, %v2581
  %v2588 = vsel %vm137, %v2581, %v2583
  %v2589 = vsel %vm137, %v2583, %v2585
  %v2595 = vmax.f32 %v2566, %v2586
  %v2596 = vmax.f32 %v2567, %v2587
  %v2597 = vmax.f32 %v2568, %v2588
  %v2598 = vmax.f32 %v2569, %v2589
  %v2599 = vmax.f32 %v2570, %v2585
  %2605 = vrot.lane.b32.xlu0 %v2595, 126
  %v2606 = vpop.permute.xlu0 %2605
  %2607 = vrot.lane.b32.xlu0 %v2596, 126
  %v2608 = vpop.permute.xlu0 %2607
  %2609 = vrot.lane.b32.xlu0 %v2597, 126
  %v2610 = vpop.permute.xlu0 %2609
  %2611 = vrot.lane.b32.xlu0 %v2598, 126
  %v2612 = vpop.permute.xlu0 %2611
  %2613 = vrot.lane.b32.xlu0 %v2599, 126
  %v2614 = vpop.permute.xlu0 %2613
  %v2615 = vsel %vm217, %v2606, %v2608
  %v2616 = vsel %vm217, %v2608, %v2610
  %v2617 = vsel %vm217, %v2610, %v2612
  %v2618 = vsel %vm217, %v2612, %v2614
  %v2623 = vmax.f32 %v2595, %v2615
  %v2624 = vmax.f32 %v2596, %v2616
  %v2625 = vmax.f32 %v2597, %v2617
  %v2626 = vmax.f32 %v2598, %v2618
  %2627 = vrot.lane.b32.xlu0 %v2566, 124
  %v2628 = vpop.permute.xlu0 %2627
  %2629 = vrot.lane.b32.xlu0 %v2567, 124
  %v2630 = vpop.permute.xlu0 %2629
  %2631 = vrot.lane.b32.xlu0 %v2568, 124
  %v2632 = vpop.permute.xlu0 %2631
  %2633 = vrot.lane.b32.xlu0 %v2569, 124
  %v2634 = vpop.permute.xlu0 %2633
  %2635 = vrot.lane.b32.xlu0 %v2570, 124
  %v2636 = vpop.permute.xlu0 %2635
  %v2637 = vsel %vm377, %v2628, %v2630
  %v2638 = vsel %vm377, %v2630, %v2632
  %v2639 = vsel %vm377, %v2632, %v2634
  %v2640 = vsel %vm377, %v2634, %v2636
  %v2645 = vmax.f32 %v2623, %v2637
  %v2646 = vmax.f32 %v2624, %v2638
  %v2647 = vmax.f32 %v2625, %v2639
  %v2648 = vmax.f32 %v2626, %v2640
  %2649 = vmatprep.subr.mxu0 0.0
  %2650 = vmatpush1.msra.mxu0 %v507
  %2651 = vmatprep.subr.mxu0 0.0
  %2652 = vmatpush1.msra.mxu0 %v508
  %2653 = vmatprep.subr.mxu0 0.0
  %2654 = vmatpush1.msra.mxu0 %v509
  %2655 = vmatprep.subr.mxu0 0.0
  %2656 = vmatpush1.msra.mxu0 %v510
  %2657 = vmatprep.subr.mxu0 0.0
  %2658 = vmatpush1.msra.mxu0 %v511
  %2659 = vmatprep.subr.mxu0 0.0
  %2660 = vmatpush1.msra.mxu0 %v512
  %2661 = vmatprep.subr.mxu0 0.0
  %2662 = vmatpush1.msra.mxu0 %v513
  %2663 = vmatprep.subr.mxu0 0.0
  %2664 = vmatpush1.msra.mxu0 %v514
  %2665 = vmatprep.subr.mxu0 0.0
  %2666 = vmatpush1.msra.mxu0 %v515
  %2667 = vmatprep.subr.mxu0 0.0
  %2668 = vmatpush1.msra.mxu0 %v516
  %2669 = vmatprep.subr.mxu0 0.0
  %2670 = vmatpush1.msra.mxu0 %v517
  %2671 = vmatprep.subr.mxu0 0.0
  %2672 = vmatpush1.msra.mxu0 %v518
  %2673 = vmatprep.subr.mxu0 0.0
  %2674 = vmatpush1.msra.mxu0 %v519
  %2675 = vmatprep.subr.mxu0 0.0
  %2676 = vmatpush1.msra.mxu0 %v520
  %2677 = vmatprep.subr.mxu0 0.0
  %2678 = vmatpush1.msra.mxu0 %v521
  %2679 = vmatprep.subr.mxu0 0.0
  %2680 = vmatpush1.msra.mxu0 %v522
  %2681 = vmatprep.subr.mxu0 0.0
  %2682 = vmatpush1.msra.mxu0 %v523
  %2683 = vmatprep.subr.mxu0 0.0
  %2684 = vmatpush1.msra.mxu0 %v524
  %2685 = vmatprep.subr.mxu0 0.0
  %2686 = vmatpush1.msra.mxu0 %v525
  %2687 = vmatprep.subr.mxu0 0.0
  %2688 = vmatpush1.msra.mxu0 %v526
  %2689 = vmatprep.subr.mxu0 0.0
  %2690 = vmatpush1.msra.mxu0 %v527
  %2691 = vmatprep.subr.mxu0 0.0
  %2692 = vmatpush1.msra.mxu0 %v528
  %2693 = vmatprep.subr.mxu0 0.0
  %2694 = vmatpush1.msra.mxu0 %v529
  %2695 = vmatprep.subr.mxu0 0.0
  %2696 = vmatpush1.msra.mxu0 %v530
  %2697 = vmatprep.subr.mxu0 0.0
  %2698 = vmatpush1.msra.mxu0 %v531
  %2699 = vmatprep.subr.mxu0 0.0
  %2700 = vmatpush1.msra.mxu0 %v532
  %2701 = vmatprep.subr.mxu0 0.0
  %2702 = vmatpush1.msra.mxu0 %v533
  %2703 = vmatprep.subr.mxu0 0.0
  %2704 = vmatpush1.msra.mxu0 %v534
  %2705 = vmatprep.subr.mxu0 0.0
  %2706 = vmatpush1.msra.mxu0 %v535
  %2707 = vmatprep.subr.mxu0 0.0
  %2708 = vmatpush1.msra.mxu0 %v536
  %2709 = vmatprep.subr.mxu0 0.0
  %2710 = vmatpush1.msra.mxu0 %v537
  %2711 = vmatprep.subr.mxu0 0.0
  %2712 = vmatpush1.msra.mxu0 %v538
  %2713 = vmatprep.mubr.f32.mxu0 %v2646
  %2714 = vmatmul.mubr.f32.gmra.mrb[0].mxu0 %v2645
  %v2715 = vpop.f32.mrb[0].mxu0
  %v2716 = vadd.f32 %v576, %v2715
  %v2717 = vpop.f32.mrb[0].mxu0
  %2718 = vdwg.mxu0
  %2719 = vmatprep.subr.mxu0 0.0
  %2720 = vmatpush1.msra.mxu0 %v539
  %2721 = vmatprep.subr.mxu0 0.0
  %2722 = vmatpush1.msra.mxu0 %v540
  %2723 = vmatprep.subr.mxu0 0.0
  %2724 = vmatpush1.msra.mxu0 %v541
  %2725 = vmatprep.subr.mxu0 0.0
  %2726 = vmatpush1.msra.mxu0 %v542
  %2727 = vmatprep.subr.mxu0 0.0
  %2728 = vmatpush1.msra.mxu0 %v543
  %2729 = vmatprep.subr.mxu0 0.0
  %2730 = vmatpush1.msra.mxu0 %v544
  %2731 = vmatprep.subr.mxu0 0.0
  %2732 = vmatpush1.msra.mxu0 %v545
  %2733 = vmatprep.subr.mxu0 0.0
  %2734 = vmatpush1.msra.mxu0 %v546
  %2735 = vmatprep.subr.mxu0 0.0
  %2736 = vmatpush1.msra.mxu0 %v547
  %2737 = vmatprep.subr.mxu0 0.0
  %2738 = vmatpush1.msra.mxu0 %v548
  %2739 = vmatprep.subr.mxu0 0.0
  %2740 = vmatpush1.msra.mxu0 %v549
  %2741 = vmatprep.subr.mxu0 0.0
  %2742 = vmatpush1.msra.mxu0 %v550
  %2743 = vmatprep.subr.mxu0 0.0
  %2744 = vmatpush1.msra.mxu0 %v551
  %2745 = vmatprep.subr.mxu0 0.0
  %2746 = vmatpush1.msra.mxu0 %v552
  %2747 = vmatprep.subr.mxu0 0.0
  %2748 = vmatpush1.msra.mxu0 %v553
  %2749 = vmatprep.subr.mxu0 0.0
  %2750 = vmatpush1.msra.mxu0 %v554
  %2751 = vmatprep.subr.mxu0 0.0
  %2752 = vmatpush1.msra.mxu0 %v555
  %2753 = vmatprep.subr.mxu0 0.0
  %2754 = vmatpush1.msra.mxu0 %v556
  %2755 = vmatprep.subr.mxu0 0.0
  %2756 = vmatpush1.msra.mxu0 %v557
  %2757 = vmatprep.subr.mxu0 0.0
  %2758 = vmatpush1.msra.mxu0 %v558
  %2759 = vmatprep.subr.mxu0 0.0
  %2760 = vmatpush1.msra.mxu0 %v559
  %2761 = vmatprep.subr.mxu0 0.0
  %2762 = vmatpush1.msra.mxu0 %v560
  %2763 = vmatprep.subr.mxu0 0.0
  %2764 = vmatpush1.msra.mxu0 %v561
  %2765 = vmatprep.subr.mxu0 0.0
  %2766 = vmatpush1.msra.mxu0 %v562
  %2767 = vmatprep.subr.mxu0 0.0
  %2768 = vmatpush1.msra.mxu0 %v563
  %2769 = vmatprep.subr.mxu0 0.0
  %2770 = vmatpush1.msra.mxu0 %v564
  %2771 = vmatprep.subr.mxu0 0.0
  %2772 = vmatpush1.msra.mxu0 %v565
  %2773 = vmatprep.subr.mxu0 0.0
  %2774 = vmatpush1.msra.mxu0 %v566
  %2775 = vmatprep.subr.mxu0 0.0
  %2776 = vmatpush1.msra.mxu0 %v567
  %2777 = vmatprep.subr.mxu0 0.0
  %2778 = vmatpush1.msra.mxu0 %v568
  %2779 = vmatprep.subr.mxu0 0.0
  %2780 = vmatpush1.msra.mxu0 %v569
  %2781 = vmatprep.subr.mxu0 0.0
  %2782 = vmatpush1.msra.mxu0 %v570
  %2783 = vmatprep.mubr.f32.mxu0 %v2648
  %2784 = vmatmul.mubr.f32.gmra.mrb[0].mxu0 %v2647
  %v2785 = vpop.f32.mrb[0].mxu0
  %v2786 = vadd.f32 %v2716, %v2785
  %v2787 = vpop.f32.mrb[0].mxu0
  %2788 = vdwg.mxu0
  %v2789 = vmax.f32 %v2786, 0.0
  %v2791 = vsel %vm734, %v2789, 0
  %2793 = vmatprep.subr.mxu0 0.0
  %2794 = vmatpush1.msra.mxu0 %v719
  %2795 = vmatprep.subr.mxu0 0.0
  %2796 = vmatpush1.msra.mxu0 %v720
  %2797 = vmatprep.subr.mxu0 0.0
  %2798 = vmatpush1.msra.mxu0 %v721
  %2799 = vmatprep.subr.mxu0 0.0
  %2800 = vmatpush1.msra.mxu0 %v722
  %2801 = vmatprep.subr.mxu0 0.0
  %2802 = vmatpush1.msra.mxu0 %v723
  %2803 = vmatprep.subr.mxu0 0.0
  %2804 = vmatpush1.msra.mxu0 %v724
  %2805 = vmatprep.subr.mxu0 0.0
  %2806 = vmatpush1.msra.mxu0 %v725
  %2807 = vmatprep.subr.mxu0 0.0
  %2808 = vmatpush1.msra.mxu0 %v726
  %2809 = vmatprep.subr.mxu0 0.0
  %2810 = vmatpush1.msra.mxu0 0.0
  %2811 = vmatprep.subr.mxu0 0.0
  %2812 = vmatpush1.msra.mxu0 0.0
  %2813 = vmatprep.subr.mxu0 0.0
  %2814 = vmatpush1.msra.mxu0 0.0
  %2815 = vmatprep.subr.mxu0 0.0
  %2816 = vmatpush1.msra.mxu0 0.0
  %2817 = vmatprep.subr.mxu0 0.0
  %2818 = vmatpush1.msra.mxu0 0.0
  %2819 = vmatprep.subr.mxu0 0.0
  %2820 = vmatpush1.msra.mxu0 0.0
  %2821 = vmatprep.subr.mxu0 0.0
  %2822 = vmatpush1.msra.mxu0 0.0
  %2823 = vmatprep.subr.mxu0 0.0
  %2824 = vmatpush1.msra.mxu0 0.0
  %2825 = vmatprep.subr.mxu0 0.0
  %2826 = vmatpush1.msra.mxu0 0.0
  %2827 = vmatprep.subr.mxu0 0.0
  %2828 = vmatpush1.msra.mxu0 0.0
  %2829 = vmatprep.subr.mxu0 0.0
  %2830 = vmatpush1.msra.mxu0 0.0
  %2831 = vmatprep.subr.mxu0 0.0
  %2832 = vmatpush1.msra.mxu0 0.0
  %2833 = vmatprep.subr.mxu0 0.0
  %2834 = vmatpush1.msra.mxu0 0.0
  %2835 = vmatprep.subr.mxu0 0.0
  %2836 = vmatpush1.msra.mxu0 0.0
  %2837 = vmatprep.subr.mxu0 0.0
  %2838 = vmatpush1.msra.mxu0 0.0
  %2839 = vmatprep.subr.mxu0 0.0
  %2840 = vmatpush1.msra.mxu0 0.0
  %2841 = vmatprep.subr.mxu0 0.0
  %2842 = vmatpush1.msra.mxu0 0.0
  %2843 = vmatprep.subr.mxu0 0.0
  %2844 = vmatpush1.msra.mxu0 0.0
  %2845 = vmatprep.subr.mxu0 0.0
  %2846 = vmatpush1.msra.mxu0 0.0
  %2847 = vmatprep.subr.mxu0 0.0
  %2848 = vmatpush1.msra.mxu0 0.0
  %2849 = vmatprep.subr.mxu0 0.0
  %2850 = vmatpush1.msra.mxu0 0.0
  %2851 = vmatprep.subr.mxu0 0.0
  %2852 = vmatpush1.msra.mxu0 0.0
  %2853 = vmatprep.subr.mxu0 0.0
  %2854 = vmatpush1.msra.mxu0 0.0
  %2855 = vmatprep.subr.mxu0 0.0
  %2856 = vmatpush1.msra.mxu0 0.0
  %2857 = vmatprep.mubr.f32.mxu0 0.0
  %2858 = vmatmul.mubr.f32.gmra.mrb[0].mxu0 %v2791
  %v2859 = vpop.f32.mrb[0].mxu0
  %v2860 = vadd.f32 %v732, %v2859
  %v2861 = vpop.f32.mrb[0].mxu0
  %2862 = vdwg.mxu0
  %v2863 = vmax.f32 %v2860, 0.0
  %v2864 = vld [vmem:[%s7 + $0x3] sm:$0x1]
  %v2865 = vlaneseq
  %v2866 = vshrl.u32 %v2865, 7
  %v2867 = vsub.s32 0, %v2866
  %v2868 = vrot.slane %v2864, %v2867
  %v2869 = vmul.f32 %v2863, %v2868
  %v2870 = vadd.f32 %v2185, %v2869
  %vm2871 = vcmask 64512
  %v2872 = vsel %vm2871, %v2870, 0.0
  %2873 = vadd.xlane.f32.xlu0 %v2872
  %v2874 = vpop.xlane.xlu0 %2873
  %s2875 = sld [smem:[#allocation2]]
  %v2876 = vstv %s2875
  %v2877 = vadd.f32 %v2874, %v2876
  %2878 = vst.msk [vmem:[%s9] sm:$0xff] %vm107, %v2877
  // Predicated region
  $region38: #{tpu_custom_call.1} parent=0 // pred_check
    _
  $region39: #{tpu_custom_call.1} parent=0 // pred_check_branch
    %2880 = sbr.rel (0) target = $region41
  $region40: #{tpu_custom_call.1} parent=0 // pred_region
    _
  $region41: #{tpu_custom_call.1} parent=0 // pred_fallthru
    _
  // Predicated region
  $region42: #{tpu_custom_call.1} parent=0 // pred_check
    _
  $region43: #{tpu_custom_call.1} parent=0 // pred_check_branch
    %2882 = sbr.rel (0) target = $region45
  $region44: #{tpu_custom_call.1} parent=0 // pred_region
    _
  $region45: #{tpu_custom_call.1} parent=0 // pred_fallthru
    _

</llo_original>
